<compile_context>
chip_gen: v5e
topology: v5e:2x2
jax: 0.10.0
libtpu: 0.0.40
codegen_flags: <defaults>
</compile_context>

<pallas_src>
import functools

import jax
import jax.numpy as jnp
from jax.experimental import pallas as pl
from jax.experimental.pallas import tpu as pltpu

LEAKY_RELU_SLOPE = 0.3   # delightful_tts constant
LN_EPS = 1e-5            # nn.LayerNorm default eps
GN_EPS = 1e-5            # nn.GroupNorm default eps
LANES = 128              # TPU lane width; channel dims padded to multiples
HALO = 8                 # zero halo rows per batch (>= kernel_size//2, 8-aligned)
MiB = 1024 * 1024


def _round_up(n, m):
    return ((n + m - 1) // m) * m


def conformer_conv_kernel(x_ref, pd_ref, w1a_ref, w1b_ref, pi_ref, w2_ref,
                          o_ref, *, d_true, i_true, kernel_size, b_chunk, t_len):
    T = t_len
    Bc = b_chunk
    Ip = w1a_ref.shape[1]
    pad = kernel_size // 2

    x = x_ref[...]                                    # (M, Dp) f32, M = Bc*T

    # --- LayerNorm over the true feature count (padded lanes are zero) ---
    inv_d = 1.0 / d_true
    s1 = jnp.sum(x, axis=-1, keepdims=True)
    s2 = jnp.sum(x * x, axis=-1, keepdims=True)
    mu = s1 * inv_d
    var = jnp.maximum(s2 * inv_d - mu * mu, 0.0)
    inv = jax.lax.rsqrt(var + LN_EPS)

    pd = pd_ref[...]                                  # packed D-sized vectors
    g1, be1, b2 = pd[0:1, :], pd[1:2, :], pd[2:3, :]
    xn = ((x - mu) * inv) * g1 + be1

    pi = pi_ref[...]                                  # packed I-sized vectors
    b1a, b1b = pi[0:1, :], pi[1:2, :]
    bd, g2, be2 = pi[2:3, :], pi[3:4, :], pi[4:5, :]
    wd = pi[5:5 + kernel_size, :]                     # (K, Ip) depthwise taps

    # --- pointwise conv 1 + GLU (bf16 MXU operands, f32 accumulation) ---
    xn_b = xn.astype(jnp.bfloat16)
    h_a = jnp.dot(xn_b, w1a_ref[...], preferred_element_type=jnp.float32) + b1a
    h_b = jnp.dot(xn_b, w1b_ref[...], preferred_element_type=jnp.float32) + b1b
    g = h_a * jax.nn.sigmoid(h_b)                     # (M, Ip) f32, padded cols = 0

    # --- depthwise conv (SAME) + GroupNorm(1) + LeakyReLU, per batch element ---
    # TODO(synk): optional bf16 tap accumulation on v6e/v7x (keep f32 on v5e).
    zhalo = jnp.zeros((HALO, Ip), jnp.float32)
    inv_cnt = 1.0 / (float(T) * i_true)
    acts = []
    for b in range(Bc):                               # static unroll over the chunk
        gb = g[b * T:(b + 1) * T, :]                  # aligned slice (T % 8 == 0)
        gbuf = jnp.concatenate([zhalo, gb, zhalo], axis=0)   # (T + 2*HALO, Ip)
        # k shifted in-register slices of one buffer (no per-tap VMEM reloads).
        acc = gbuf[HALO - pad:HALO - pad + T, :] * wd[0:1, :]
        for k in range(1, kernel_size):
            off = HALO - pad + k
            acc = acc + gbuf[off:off + T, :] * wd[k:k + 1, :]
        dw = acc + bd                                 # (T, Ip), padded cols stay 0

        # GroupNorm(num_groups=1): one-pass stats over the true (T, I) count.
        # TODO(synk): two-pass stats (+ T tiling) for very long T*I sequences.
        gsum = jnp.sum(dw)
        gss = jnp.sum(dw * dw)
        gmu = gsum * inv_cnt
        gvar = jnp.maximum(gss * inv_cnt - gmu * gmu, 0.0)
        a_vec = g2 * jax.lax.rsqrt(gvar + GN_EPS)     # fold normalize + affine
        b_vec = be2 - gmu * a_vec
        dwn = dw * a_vec + b_vec
        acts.append(jnp.where(dwn >= 0, dwn, LEAKY_RELU_SLOPE * dwn))

    act = acts[0] if Bc == 1 else jnp.concatenate(acts, axis=0)   # (M, Ip)

    # --- pointwise conv 2 (bf16 MXU operands, f32 accumulation) ---
    out = jnp.dot(act.astype(jnp.bfloat16), w2_ref[...],
                  preferred_element_type=jnp.float32) + b2

    # TODO(synk): nn.Dropout(p=0.1) is identity at inference time; not applied.
    o_ref[...] = out.astype(o_ref.dtype)


def _vmem_capacity_bytes():
    try:
        cap = getattr(pltpu.get_tpu_info(), "vmem_capacity_bytes", None)
        if cap:
            return int(cap)
    except Exception:
        pass
    return 64 * MiB                                   # conservative (v7x-sized)


def _footprint_bytes(b_chunk, T, Dp, Ip):
    """Rough per-step VMEM footprint: IO blocks + weights + live intermediates."""
    M = b_chunk * T
    io = 2 * 2 * M * Dp * 4                           # double-buffered x / out blocks
    weights = 3 * Dp * Ip * 2 + 8 * Dp * 4 + 16 * Ip * 4
    live = (3 * M * Dp + 5 * M * Ip + 5 * (T + 2 * HALO) * Ip) * 4
    return io + weights + live


def _choose_b_chunk(B, T, Dp, Ip, budget):
    """Largest divisor of B that fits the VMEM budget, stopping once M >= 256.

    For realistic T (>= 256) this keeps B_chunk = 1, preserving >= 2 parallel
    grid steps for v7x's two TensorCores; for tiny T it folds batches into the
    matmul M dimension (the dominant win for small-T workloads).
    """
    choice = 1
    for c in range(1, B + 1):
        if B % c:
            continue
        if c > 1 and _footprint_bytes(c, T, Dp, Ip) > budget:
            break
        choice = c
        if c * T >= 256:
            break
    return choice


def conformer_conv_module(x, params):
    """x: (B, T, d_model) float32  ->  (B, T, d_model) float32 (inference)."""
    B, T, D = x.shape
    I2 = params["w1"].shape[1]
    I = I2 // 2
    K = params["wd"].shape[0]
    assert T % 8 == 0, "T must be a multiple of 8 (sublanes); pad outside."
    assert K // 2 <= HALO

    Dp = _round_up(D, LANES)
    Ip = _round_up(I, LANES)

    def pad_last(a, n):
        return jnp.pad(a, [(0, 0)] * (a.ndim - 1) + [(0, n - a.shape[-1])])

    def pad2(a, r, c):
        return jnp.pad(a, ((0, r - a.shape[0]), (0, c - a.shape[1])))

    # NOTE: correctness of the lane padding relies on every padded parameter
    # region being exactly zero — guaranteed here since jnp.pad zero-fills.
    xp = pad_last(x, Dp).reshape(B * T, Dp)
    w1a = pad2(params["w1"][:, :I], Dp, Ip).astype(jnp.bfloat16)   # GLU value half
    w1b = pad2(params["w1"][:, I:], Dp, Ip).astype(jnp.bfloat16)   # GLU gate half
    w2 = pad2(params["w2"], Ip, Dp).astype(jnp.bfloat16)
    # Packed per-channel vectors: (3, Dp) = [g1, be1, b2]; (5+K, Ip) = [b1a, b1b,
    # bd, g2, be2, wd taps].
    pd = jnp.concatenate([pad_last(params["g1"], Dp),
                          pad_last(params["be1"], Dp),
                          pad_last(params["b2"], Dp)], axis=0)
    pi = jnp.concatenate([pad_last(params["b1"][:, :I], Ip),
                          pad_last(params["b1"][:, I:], Ip),
                          pad_last(params["bd"], Ip),
                          pad_last(params["g2"], Ip),
                          pad_last(params["be2"], Ip),
                          pad_last(params["wd"], Ip)], axis=0)

    budget = int(0.8 * _vmem_capacity_bytes())        # ~102 MiB v5e/v6e, ~51 MiB v7x
    Bc = _choose_b_chunk(B, T, Dp, Ip, budget)
    steps = B // Bc
    M = Bc * T
    vmem_limit = int(min(max(int(1.3 * _footprint_bytes(Bc, T, Dp, Ip)), 16 * MiB),
                         budget))

    kernel = functools.partial(conformer_conv_kernel, d_true=float(D),
                               i_true=float(I), kernel_size=K,
                               b_chunk=Bc, t_len=T)

    flops = B * T * (6 * Dp * Ip + 2 * Ip * K)
    weight_bytes = (int(w1a.size + w1b.size + w2.size) * 2
                    + int(pd.size + pi.size) * 4)
    cost = pl.CostEstimate(flops=int(flops),
                           transcendentals=int(B * T * Ip),        # sigmoid
                           bytes_accessed=int(2 * B * T * Dp * 4 + weight_bytes))

    def build(single_buffer_weights):
        def wspec(shape):
            idx = lambda b: (0,) * len(shape)
            if single_buffer_weights:
                # Grid-invariant weights: a single VMEM copy is enough.
                return pl.BlockSpec(shape, idx, pipeline_mode=pl.Buffered(1))
            return pl.BlockSpec(shape, idx)

        grid_spec = pltpu.PrefetchScalarGridSpec(
            num_scalar_prefetch=0,
            grid=(steps,),
            in_specs=[
                pl.BlockSpec((M, Dp), lambda b: (b, 0)),   # x chunk: Bc*T rows
                wspec(pd.shape),                           # [g1, be1, b2]
                wspec(w1a.shape), wspec(w1b.shape),        # conv1 halves (bf16)
                wspec(pi.shape),                           # [b1a,b1b,bd,g2,be2,wd]
                wspec(w2.shape),                           # conv2 (bf16)
            ],
            out_specs=pl.BlockSpec((M, Dp), lambda b: (b, 0)),
        )
        return pl.pallas_call(
            kernel,
            out_shape=jax.ShapeDtypeStruct((B * T, Dp), x.dtype),
            grid_spec=grid_spec,
            compiler_params=pltpu.CompilerParams(
                dimension_semantics=("parallel",),
                vmem_limit_bytes=vmem_limit),
            cost_estimate=cost,
        )(xp, pd, w1a, w1b, pi, w2)

    try:
        out = build(True)
    except Exception:
        # Older jax without BlockSpec.pipeline_mode / Buffered(1): double-buffer.
        out = build(False)

    return out.reshape(B, T, Dp)[:, :, :D]


def reference(x, p):
    """Pure-JAX f32 reference for the same forward pass (sanity check)."""
    mu = jnp.mean(x, -1, keepdims=True)
    var = jnp.mean((x - mu) ** 2, -1, keepdims=True)
    xn = (x - mu) / jnp.sqrt(var + LN_EPS) * p["g1"] + p["be1"]
    h = jnp.einsum("btd,df->btf", xn, p["w1"]) + p["b1"]
    I = h.shape[-1] // 2
    g = h[..., :I] * jax.nn.sigmoid(h[..., I:])
    K = p["wd"].shape[0]
    pad = K // 2
    T = g.shape[1]
    gp = jnp.pad(g, ((0, 0), (pad, pad), (0, 0)))
    dw = sum(gp[:, k:k + T, :] * p["wd"][k] for k in range(K)) + p["bd"]
    gmu = jnp.mean(dw, axis=(1, 2), keepdims=True)
    gvar = jnp.mean((dw - gmu) ** 2, axis=(1, 2), keepdims=True)
    dwn = (dw - gmu) / jnp.sqrt(gvar + GN_EPS) * p["g2"] + p["be2"]
    act = jnp.where(dwn >= 0, dwn, LEAKY_RELU_SLOPE * dwn)
    return jnp.einsum("bti,id->btd", act, p["w2"]) + p["b2"]


def make_params(key, d_model, expansion_factor=2, kernel_size=7):
    inner = d_model * expansion_factor
    ks = jax.random.split(key, 6)
    scale = 0.1
    return {
        # LayerNorm(d_model)
        "g1": jnp.ones((1, d_model), jnp.float32),
        "be1": jnp.zeros((1, d_model), jnp.float32),
        # PointwiseConv1d(d_model, inner*2): weight (2I, D, 1) stored transposed (D, 2I)
        "w1": scale * jax.random.normal(ks[0], (d_model, inner * 2), jnp.float32),
        "b1": scale * jax.random.normal(ks[1], (1, inner * 2), jnp.float32),
        # DepthWiseConv1d(inner, inner, k): weight (I, 1, K) stored as (K, I)
        "wd": scale * jax.random.normal(ks[2], (kernel_size, inner), jnp.float32),
        "bd": scale * jax.random.normal(ks[3], (1, inner), jnp.float32),
        # GroupNorm(1, inner)
        "g2": jnp.ones((1, inner), jnp.float32),
        "be2": jnp.zeros((1, inner), jnp.float32),
        # PointwiseConv1d(inner, d_model): weight (D, I, 1) stored transposed (I, D)
        "w2": scale * jax.random.normal(ks[4], (inner, d_model), jnp.float32),
        "b2": scale * jax.random.normal(ks[5], (1, d_model), jnp.float32),
    }


if __name__ == "__main__":
    B, T, d_model = 2, 16, 32          # inner_dim = 64 -> padded lanes Dp = Ip = 128
    key = jax.random.PRNGKey(0)
    kx, kp = jax.random.split(key)
    x = jax.random.normal(kx, (B, T, d_model), jnp.float32)
    params = make_params(kp, d_model)

    out = jax.block_until_ready(conformer_conv_module(x, params))
    ref = jax.block_until_ready(reference(x, params))

    assert out.shape == (B, T, d_model)
    assert bool(jnp.all(jnp.isfinite(out)))
    # bf16 MXU operands -> compare against the f32 reference with a looser tolerance.
    max_err = float(jnp.max(jnp.abs(out - ref)))
    assert jnp.allclose(out, ref, atol=5e-2, rtol=5e-2), f"mismatch, max_err={max_err}"
    print("KERNEL_OK")
</pallas_src>

<mosaic_0001>
module attributes {stable_mosaic.version = 11 : i64} {
  func.func @conformer_conv_kernel(%arg0: i32, %arg1: memref<32x128xf32, #tpu.memory_space<vmem>>, %arg2: memref<3x128xf32, #tpu.memory_space<vmem>>, %arg3: memref<128x128xbf16, #tpu.memory_space<vmem>>, %arg4: memref<128x128xbf16, #tpu.memory_space<vmem>>, %arg5: memref<12x128xf32, #tpu.memory_space<vmem>>, %arg6: memref<128x128xbf16, #tpu.memory_space<vmem>>, %arg7: memref<32x128xf32, #tpu.memory_space<vmem>>) attributes {dimension_semantics = [#tpu.dimension_semantics<parallel>], iteration_bounds = array<i64: 1>, scalar_prefetch = 0 : i64, scratch_operands = 0 : i64, tpu.core_type = #tpu.core_type<tc>, window_params = [{transform_indices = @transform_0, window_bounds = array<i64: 32, 128>}, {pipeline_mode = #tpu.pipeline_mode<synchronous>, transform_indices = @transform_1, window_bounds = array<i64: 3, 128>}, {pipeline_mode = #tpu.pipeline_mode<synchronous>, transform_indices = @transform_2, window_bounds = array<i64: 128, 128>}, {pipeline_mode = #tpu.pipeline_mode<synchronous>, transform_indices = @transform_3, window_bounds = array<i64: 128, 128>}, {pipeline_mode = #tpu.pipeline_mode<synchronous>, transform_indices = @transform_4, window_bounds = array<i64: 12, 128>}, {pipeline_mode = #tpu.pipeline_mode<synchronous>, transform_indices = @transform_5, window_bounds = array<i64: 128, 128>}, {transform_indices = @transform_6, window_bounds = array<i64: 32, 128>}]} {
    %c0 = arith.constant 0 : index
    %c0_0 = arith.constant 0 : index
    %0 = vector.load %arg1[%c0, %c0_0] : memref<32x128xf32, #tpu.memory_space<vmem>>, vector<32x128xf32>
    %cst = arith.constant dense<0.000000e+00> : vector<32xf32>
    %1 = vector.multi_reduction <add>, %0, %cst [1] : vector<32x128xf32> to vector<32xf32>
    %2 = vector.shape_cast %1 : vector<32xf32> to vector<32x1xf32>
    %3 = arith.mulf %0, %0 : vector<32x128xf32>
    %cst_1 = arith.constant dense<0.000000e+00> : vector<32xf32>
    %4 = vector.multi_reduction <add>, %3, %cst_1 [1] : vector<32x128xf32> to vector<32xf32>
    %5 = vector.shape_cast %4 : vector<32xf32> to vector<32x1xf32>
    %cst_2 = arith.constant 3.125000e-02 : f32
    %6 = vector.broadcast %cst_2 : f32 to vector<32x1xf32>
    %7 = arith.mulf %2, %6 : vector<32x1xf32>
    %cst_3 = arith.constant 3.125000e-02 : f32
    %8 = vector.broadcast %cst_3 : f32 to vector<32x1xf32>
    %9 = arith.mulf %5, %8 : vector<32x1xf32>
    %10 = arith.mulf %7, %7 : vector<32x1xf32>
    %11 = arith.subf %9, %10 : vector<32x1xf32>
    %cst_4 = arith.constant 0.000000e+00 : f32
    %12 = vector.broadcast %cst_4 : f32 to vector<32x1xf32>
    %13 = arith.maximumf %11, %12 : vector<32x1xf32>
    %cst_5 = arith.constant 9.99999974E-6 : f32
    %14 = vector.broadcast %cst_5 : f32 to vector<32x1xf32>
    %15 = arith.addf %13, %14 : vector<32x1xf32>
    %16 = math.rsqrt %15 : vector<32x1xf32>
    %c0_6 = arith.constant 0 : index
    %c0_7 = arith.constant 0 : index
    %17 = vector.load %arg2[%c0_6, %c0_7] : memref<3x128xf32, #tpu.memory_space<vmem>>, vector<3x128xf32>
    %18 = vector.extract_strided_slice %17 {offsets = [0, 0], sizes = [1, 128], strides = [1, 1]} : vector<3x128xf32> to vector<1x128xf32>
    %19 = vector.extract_strided_slice %17 {offsets = [1, 0], sizes = [1, 128], strides = [1, 1]} : vector<3x128xf32> to vector<1x128xf32>
    %20 = vector.extract_strided_slice %17 {offsets = [2, 0], sizes = [1, 128], strides = [1, 1]} : vector<3x128xf32> to vector<1x128xf32>
    %21 = vector.broadcast %7 : vector<32x1xf32> to vector<32x128xf32>
    %22 = arith.subf %0, %21 : vector<32x128xf32>
    %23 = vector.broadcast %16 : vector<32x1xf32> to vector<32x128xf32>
    %24 = arith.mulf %22, %23 : vector<32x128xf32>
    %25 = vector.broadcast %18 : vector<1x128xf32> to vector<32x128xf32>
    %26 = arith.mulf %24, %25 : vector<32x128xf32>
    %27 = vector.broadcast %19 : vector<1x128xf32> to vector<32x128xf32>
    %28 = arith.addf %26, %27 : vector<32x128xf32>
    %c0_8 = arith.constant 0 : index
    %c0_9 = arith.constant 0 : index
    %29 = vector.load %arg5[%c0_8, %c0_9] : memref<12x128xf32, #tpu.memory_space<vmem>>, vector<12x128xf32>
    %30 = vector.extract_strided_slice %29 {offsets = [0, 0], sizes = [1, 128], strides = [1, 1]} : vector<12x128xf32> to vector<1x128xf32>
    %31 = vector.extract_strided_slice %29 {offsets = [1, 0], sizes = [1, 128], strides = [1, 1]} : vector<12x128xf32> to vector<1x128xf32>
    %32 = vector.extract_strided_slice %29 {offsets = [2, 0], sizes = [1, 128], strides = [1, 1]} : vector<12x128xf32> to vector<1x128xf32>
    %33 = vector.extract_strided_slice %29 {offsets = [3, 0], sizes = [1, 128], strides = [1, 1]} : vector<12x128xf32> to vector<1x128xf32>
    %34 = vector.extract_strided_slice %29 {offsets = [4, 0], sizes = [1, 128], strides = [1, 1]} : vector<12x128xf32> to vector<1x128xf32>
    %35 = vector.extract_strided_slice %29 {offsets = [5, 0], sizes = [7, 128], strides = [1, 1]} : vector<12x128xf32> to vector<7x128xf32>
    %36 = arith.truncf %28 : vector<32x128xf32> to vector<32x128xbf16>
    %c0_10 = arith.constant 0 : index
    %c0_11 = arith.constant 0 : index
    %37 = vector.load %arg3[%c0_10, %c0_11] : memref<128x128xbf16, #tpu.memory_space<vmem>>, vector<128x128xbf16>
    %cst_12 = arith.constant dense<0.000000e+00> : vector<32x128xf32>
    %38 = tpu.matmul %36, %37, %cst_12 {dimension_numbers = #tpu.dot_dimension_numbers<[1], [0], [0], [1], [0, 0, 1, 1], [], []>} : vector<32x128xbf16>, vector<128x128xbf16>, vector<32x128xf32> -> vector<32x128xf32>
    %39 = vector.broadcast %30 : vector<1x128xf32> to vector<32x128xf32>
    %40 = arith.addf %38, %39 : vector<32x128xf32>
    %c0_13 = arith.constant 0 : index
    %c0_14 = arith.constant 0 : index
    %41 = vector.load %arg4[%c0_13, %c0_14] : memref<128x128xbf16, #tpu.memory_space<vmem>>, vector<128x128xbf16>
    %cst_15 = arith.constant dense<0.000000e+00> : vector<32x128xf32>
    %42 = tpu.matmul %36, %41, %cst_15 {dimension_numbers = #tpu.dot_dimension_numbers<[1], [0], [0], [1], [0, 0, 1, 1], [], []>} : vector<32x128xbf16>, vector<128x128xbf16>, vector<32x128xf32> -> vector<32x128xf32>
    %43 = vector.broadcast %31 : vector<1x128xf32> to vector<32x128xf32>
    %44 = arith.addf %42, %43 : vector<32x128xf32>
    %45 = arith.negf %44 : vector<32x128xf32>
    %46 = math.exp %45 : vector<32x128xf32>
    %cst_16 = arith.constant 1.000000e+00 : f32
    %47 = vector.broadcast %cst_16 : f32 to vector<32x128xf32>
    %48 = arith.addf %47, %46 : vector<32x128xf32>
    %49 = arith.divf %47, %48 : vector<32x128xf32>
    %50 = arith.mulf %40, %49 : vector<32x128xf32>
    %cst_17 = arith.constant 0.000000e+00 : f32
    %51 = vector.broadcast %cst_17 : f32 to vector<8x128xf32>
    %52 = vector.extract_strided_slice %50 {offsets = [0, 0], sizes = [16, 128], strides = [1, 1]} : vector<32x128xf32> to vector<16x128xf32>
    %53 = tpu.concatenate %51, %52, %51 in 0 : vector<8x128xf32>, vector<16x128xf32>, vector<8x128xf32> -> vector<32x128xf32>
    %54 = vector.extract_strided_slice %53 {offsets = [5, 0], sizes = [16, 128], strides = [1, 1]} : vector<32x128xf32> to vector<16x128xf32>
    %55 = vector.extract_strided_slice %35 {offsets = [0, 0], sizes = [1, 128], strides = [1, 1]} : vector<7x128xf32> to vector<1x128xf32>
    %56 = vector.broadcast %55 : vector<1x128xf32> to vector<16x128xf32>
    %57 = arith.mulf %54, %56 : vector<16x128xf32>
    %58 = vector.extract_strided_slice %53 {offsets = [6, 0], sizes = [16, 128], strides = [1, 1]} : vector<32x128xf32> to vector<16x128xf32>
    %59 = vector.extract_strided_slice %35 {offsets = [1, 0], sizes = [1, 128], strides = [1, 1]} : vector<7x128xf32> to vector<1x128xf32>
    %60 = vector.broadcast %59 : vector<1x128xf32> to vector<16x128xf32>
    %61 = arith.mulf %58, %60 : vector<16x128xf32>
    %62 = arith.addf %57, %61 : vector<16x128xf32>
    %63 = vector.extract_strided_slice %53 {offsets = [7, 0], sizes = [16, 128], strides = [1, 1]} : vector<32x128xf32> to vector<16x128xf32>
    %64 = vector.extract_strided_slice %35 {offsets = [2, 0], sizes = [1, 128], strides = [1, 1]} : vector<7x128xf32> to vector<1x128xf32>
    %65 = vector.broadcast %64 : vector<1x128xf32> to vector<16x128xf32>
    %66 = arith.mulf %63, %65 : vector<16x128xf32>
    %67 = arith.addf %62, %66 : vector<16x128xf32>
    %68 = vector.extract_strided_slice %53 {offsets = [8, 0], sizes = [16, 128], strides = [1, 1]} : vector<32x128xf32> to vector<16x128xf32>
    %69 = vector.extract_strided_slice %35 {offsets = [3, 0], sizes = [1, 128], strides = [1, 1]} : vector<7x128xf32> to vector<1x128xf32>
    %70 = vector.broadcast %69 : vector<1x128xf32> to vector<16x128xf32>
    %71 = arith.mulf %68, %70 : vector<16x128xf32>
    %72 = arith.addf %67, %71 : vector<16x128xf32>
    %73 = vector.extract_strided_slice %53 {offsets = [9, 0], sizes = [16, 128], strides = [1, 1]} : vector<32x128xf32> to vector<16x128xf32>
    %74 = vector.extract_strided_slice %35 {offsets = [4, 0], sizes = [1, 128], strides = [1, 1]} : vector<7x128xf32> to vector<1x128xf32>
    %75 = vector.broadcast %74 : vector<1x128xf32> to vector<16x128xf32>
    %76 = arith.mulf %73, %75 : vector<16x128xf32>
    %77 = arith.addf %72, %76 : vector<16x128xf32>
    %78 = vector.extract_strided_slice %53 {offsets = [10, 0], sizes = [16, 128], strides = [1, 1]} : vector<32x128xf32> to vector<16x128xf32>
    %79 = vector.extract_strided_slice %35 {offsets = [5, 0], sizes = [1, 128], strides = [1, 1]} : vector<7x128xf32> to vector<1x128xf32>
    %80 = vector.broadcast %79 : vector<1x128xf32> to vector<16x128xf32>
    %81 = arith.mulf %78, %80 : vector<16x128xf32>
    %82 = arith.addf %77, %81 : vector<16x128xf32>
    %83 = vector.extract_strided_slice %53 {offsets = [11, 0], sizes = [16, 128], strides = [1, 1]} : vector<32x128xf32> to vector<16x128xf32>
    %84 = vector.extract_strided_slice %35 {offsets = [6, 0], sizes = [1, 128], strides = [1, 1]} : vector<7x128xf32> to vector<1x128xf32>
    %85 = vector.broadcast %84 : vector<1x128xf32> to vector<16x128xf32>
    %86 = arith.mulf %83, %85 : vector<16x128xf32>
    %87 = arith.addf %82, %86 : vector<16x128xf32>
    %88 = vector.broadcast %32 : vector<1x128xf32> to vector<16x128xf32>
    %89 = arith.addf %87, %88 : vector<16x128xf32>
    %90 = vector.shape_cast %89 : vector<16x128xf32> to vector<1x16x128xf32>
    %cst_18 = arith.constant dense<0.000000e+00> : vector<1xf32>
    %91 = vector.multi_reduction <add>, %90, %cst_18 [1, 2] : vector<1x16x128xf32> to vector<1xf32>
    %92 = vector.shape_cast %91 : vector<1xf32> to vector<1x1x1xf32>
    %93 = vector.extract %92[0, 0, 0] : f32 from vector<1x1x1xf32>
    %94 = arith.mulf %89, %89 : vector<16x128xf32>
    %95 = vector.shape_cast %94 : vector<16x128xf32> to vector<1x16x128xf32>
    %cst_19 = arith.constant dense<0.000000e+00> : vector<1xf32>
    %96 = vector.multi_reduction <add>, %95, %cst_19 [1, 2] : vector<1x16x128xf32> to vector<1xf32>
    %97 = vector.shape_cast %96 : vector<1xf32> to vector<1x1x1xf32>
    %98 = vector.extract %97[0, 0, 0] : f32 from vector<1x1x1xf32>
    %cst_20 = arith.constant 9.765625E-4 : f32
    %99 = arith.mulf %93, %cst_20 : f32
    %cst_21 = arith.constant 9.765625E-4 : f32
    %100 = arith.mulf %98, %cst_21 : f32
    %101 = arith.mulf %99, %99 : f32
    %102 = arith.subf %100, %101 : f32
    %cst_22 = arith.constant 0.000000e+00 : f32
    %103 = arith.maximumf %102, %cst_22 : f32
    %cst_23 = arith.constant 9.99999974E-6 : f32
    %104 = arith.addf %103, %cst_23 : f32
    %105 = math.rsqrt %104 : f32
    %106 = vector.broadcast %105 : f32 to vector<1x128xf32>
    %107 = arith.mulf %33, %106 : vector<1x128xf32>
    %108 = vector.broadcast %99 : f32 to vector<1x128xf32>
    %109 = arith.mulf %108, %107 : vector<1x128xf32>
    %110 = arith.subf %34, %109 : vector<1x128xf32>
    %111 = vector.broadcast %107 : vector<1x128xf32> to vector<16x128xf32>
    %112 = arith.mulf %89, %111 : vector<16x128xf32>
    %113 = vector.broadcast %110 : vector<1x128xf32> to vector<16x128xf32>
    %114 = arith.addf %112, %113 : vector<16x128xf32>
    %cst_24 = arith.constant 0.000000e+00 : f32
    %115 = vector.broadcast %cst_24 : f32 to vector<16x128xf32>
    %116 = arith.cmpf oge, %114, %115 : vector<16x128xf32>
    %cst_25 = arith.constant 3.000000e-01 : f32
    %117 = vector.broadcast %cst_25 : f32 to vector<16x128xf32>
    %118 = arith.mulf %117, %114 : vector<16x128xf32>
    %119 = arith.select %116, %114, %118 : vector<16x128xi1>, vector<16x128xf32>
    %120 = vector.extract_strided_slice %50 {offsets = [16, 0], sizes = [16, 128], strides = [1, 1]} : vector<32x128xf32> to vector<16x128xf32>
    %121 = tpu.concatenate %51, %120, %51 in 0 : vector<8x128xf32>, vector<16x128xf32>, vector<8x128xf32> -> vector<32x128xf32>
    %122 = vector.extract_strided_slice %121 {offsets = [5, 0], sizes = [16, 128], strides = [1, 1]} : vector<32x128xf32> to vector<16x128xf32>
    %123 = vector.extract_strided_slice %35 {offsets = [0, 0], sizes = [1, 128], strides = [1, 1]} : vector<7x128xf32> to vector<1x128xf32>
    %124 = vector.broadcast %123 : vector<1x128xf32> to vector<16x128xf32>
    %125 = arith.mulf %122, %124 : vector<16x128xf32>
    %126 = vector.extract_strided_slice %121 {offsets = [6, 0], sizes = [16, 128], strides = [1, 1]} : vector<32x128xf32> to vector<16x128xf32>
    %127 = vector.extract_strided_slice %35 {offsets = [1, 0], sizes = [1, 128], strides = [1, 1]} : vector<7x128xf32> to vector<1x128xf32>
    %128 = vector.broadcast %127 : vector<1x128xf32> to vector<16x128xf32>
    %129 = arith.mulf %126, %128 : vector<16x128xf32>
    %130 = arith.addf %125, %129 : vector<16x128xf32>
    %131 = vector.extract_strided_slice %121 {offsets = [7, 0], sizes = [16, 128], strides = [1, 1]} : vector<32x128xf32> to vector<16x128xf32>
    %132 = vector.extract_strided_slice %35 {offsets = [2, 0], sizes = [1, 128], strides = [1, 1]} : vector<7x128xf32> to vector<1x128xf32>
    %133 = vector.broadcast %132 : vector<1x128xf32> to vector<16x128xf32>
    %134 = arith.mulf %131, %133 : vector<16x128xf32>
    %135 = arith.addf %130, %134 : vector<16x128xf32>
    %136 = vector.extract_strided_slice %121 {offsets = [8, 0], sizes = [16, 128], strides = [1, 1]} : vector<32x128xf32> to vector<16x128xf32>
    %137 = vector.extract_strided_slice %35 {offsets = [3, 0], sizes = [1, 128], strides = [1, 1]} : vector<7x128xf32> to vector<1x128xf32>
    %138 = vector.broadcast %137 : vector<1x128xf32> to vector<16x128xf32>
    %139 = arith.mulf %136, %138 : vector<16x128xf32>
    %140 = arith.addf %135, %139 : vector<16x128xf32>
    %141 = vector.extract_strided_slice %121 {offsets = [9, 0], sizes = [16, 128], strides = [1, 1]} : vector<32x128xf32> to vector<16x128xf32>
    %142 = vector.extract_strided_slice %35 {offsets = [4, 0], sizes = [1, 128], strides = [1, 1]} : vector<7x128xf32> to vector<1x128xf32>
    %143 = vector.broadcast %142 : vector<1x128xf32> to vector<16x128xf32>
    %144 = arith.mulf %141, %143 : vector<16x128xf32>
    %145 = arith.addf %140, %144 : vector<16x128xf32>
    %146 = vector.extract_strided_slice %121 {offsets = [10, 0], sizes = [16, 128], strides = [1, 1]} : vector<32x128xf32> to vector<16x128xf32>
    %147 = vector.extract_strided_slice %35 {offsets = [5, 0], sizes = [1, 128], strides = [1, 1]} : vector<7x128xf32> to vector<1x128xf32>
    %148 = vector.broadcast %147 : vector<1x128xf32> to vector<16x128xf32>
    %149 = arith.mulf %146, %148 : vector<16x128xf32>
    %150 = arith.addf %145, %149 : vector<16x128xf32>
    %151 = vector.extract_strided_slice %121 {offsets = [11, 0], sizes = [16, 128], strides = [1, 1]} : vector<32x128xf32> to vector<16x128xf32>
    %152 = vector.extract_strided_slice %35 {offsets = [6, 0], sizes = [1, 128], strides = [1, 1]} : vector<7x128xf32> to vector<1x128xf32>
    %153 = vector.broadcast %152 : vector<1x128xf32> to vector<16x128xf32>
    %154 = arith.mulf %151, %153 : vector<16x128xf32>
    %155 = arith.addf %150, %154 : vector<16x128xf32>
    %156 = vector.broadcast %32 : vector<1x128xf32> to vector<16x128xf32>
    %157 = arith.addf %155, %156 : vector<16x128xf32>
    %158 = vector.shape_cast %157 : vector<16x128xf32> to vector<1x16x128xf32>
    %cst_26 = arith.constant dense<0.000000e+00> : vector<1xf32>
    %159 = vector.multi_reduction <add>, %158, %cst_26 [1, 2] : vector<1x16x128xf32> to vector<1xf32>
    %160 = vector.shape_cast %159 : vector<1xf32> to vector<1x1x1xf32>
    %161 = vector.extract %160[0, 0, 0] : f32 from vector<1x1x1xf32>
    %162 = arith.mulf %157, %157 : vector<16x128xf32>
    %163 = vector.shape_cast %162 : vector<16x128xf32> to vector<1x16x128xf32>
    %cst_27 = arith.constant dense<0.000000e+00> : vector<1xf32>
    %164 = vector.multi_reduction <add>, %163, %cst_27 [1, 2] : vector<1x16x128xf32> to vector<1xf32>
    %165 = vector.shape_cast %164 : vector<1xf32> to vector<1x1x1xf32>
    %166 = vector.extract %165[0, 0, 0] : f32 from vector<1x1x1xf32>
    %cst_28 = arith.constant 9.765625E-4 : f32
    %167 = arith.mulf %161, %cst_28 : f32
    %cst_29 = arith.constant 9.765625E-4 : f32
    %168 = arith.mulf %166, %cst_29 : f32
    %169 = arith.mulf %167, %167 : f32
    %170 = arith.subf %168, %169 : f32
    %cst_30 = arith.constant 0.000000e+00 : f32
    %171 = arith.maximumf %170, %cst_30 : f32
    %cst_31 = arith.constant 9.99999974E-6 : f32
    %172 = arith.addf %171, %cst_31 : f32
    %173 = math.rsqrt %172 : f32
    %174 = vector.broadcast %173 : f32 to vector<1x128xf32>
    %175 = arith.mulf %33, %174 : vector<1x128xf32>
    %176 = vector.broadcast %167 : f32 to vector<1x128xf32>
    %177 = arith.mulf %176, %175 : vector<1x128xf32>
    %178 = arith.subf %34, %177 : vector<1x128xf32>
    %179 = vector.broadcast %175 : vector<1x128xf32> to vector<16x128xf32>
    %180 = arith.mulf %157, %179 : vector<16x128xf32>
    %181 = vector.broadcast %178 : vector<1x128xf32> to vector<16x128xf32>
    %182 = arith.addf %180, %181 : vector<16x128xf32>
    %cst_32 = arith.constant 0.000000e+00 : f32
    %183 = vector.broadcast %cst_32 : f32 to vector<16x128xf32>
    %184 = arith.cmpf oge, %182, %183 : vector<16x128xf32>
    %cst_33 = arith.constant 3.000000e-01 : f32
    %185 = vector.broadcast %cst_33 : f32 to vector<16x128xf32>
    %186 = arith.mulf %185, %182 : vector<16x128xf32>
    %187 = arith.select %184, %182, %186 : vector<16x128xi1>, vector<16x128xf32>
    %188 = tpu.concatenate %119, %187 in 0 : vector<16x128xf32>, vector<16x128xf32> -> vector<32x128xf32>
    %189 = arith.truncf %188 : vector<32x128xf32> to vector<32x128xbf16>
    %c0_34 = arith.constant 0 : index
    %c0_35 = arith.constant 0 : index
    %190 = vector.load %arg6[%c0_34, %c0_35] : memref<128x128xbf16, #tpu.memory_space<vmem>>, vector<128x128xbf16>
    %cst_36 = arith.constant dense<0.000000e+00> : vector<32x128xf32>
    %191 = tpu.matmul %189, %190, %cst_36 {dimension_numbers = #tpu.dot_dimension_numbers<[1], [0], [0], [1], [0, 0, 1, 1], [], []>} : vector<32x128xbf16>, vector<128x128xbf16>, vector<32x128xf32> -> vector<32x128xf32>
    %192 = vector.broadcast %20 : vector<1x128xf32> to vector<32x128xf32>
    %193 = arith.addf %191, %192 : vector<32x128xf32>
    %c0_37 = arith.constant 0 : index
    %c0_38 = arith.constant 0 : index
    %194 = vector.load %arg7[%c0_37, %c0_38] : memref<32x128xf32, #tpu.memory_space<vmem>>, vector<32x128xf32>
    tpu.vector_store %arg7[%c0_37, %c0_38], %193 {strides = array<i32>} : memref<32x128xf32, #tpu.memory_space<vmem>>, vector<32x128xf32>,
    return
  }
  func.func @transform_0(%arg0: i32) -> (i32, i32) {
    %c0_i32 = arith.constant 0 : i32
    %c0_i32_0 = arith.constant 0 : i32
    return %arg0, %c0_i32 : i32, i32
  }
  func.func @transform_1(%arg0: i32) -> (i32, i32) {
    %c0_i32 = arith.constant 0 : i32
    %c0_i32_0 = arith.constant 0 : i32
    %c0_i32_1 = arith.constant 0 : i32
    return %c0_i32, %c0_i32_0 : i32, i32
  }
  func.func @transform_2(%arg0: i32) -> (i32, i32) {
    %c0_i32 = arith.constant 0 : i32
    %c0_i32_0 = arith.constant 0 : i32
    %c0_i32_1 = arith.constant 0 : i32
    return %c0_i32, %c0_i32_0 : i32, i32
  }
  func.func @transform_3(%arg0: i32) -> (i32, i32) {
    %c0_i32 = arith.constant 0 : i32
    %c0_i32_0 = arith.constant 0 : i32
    %c0_i32_1 = arith.constant 0 : i32
    return %c0_i32, %c0_i32_0 : i32, i32
  }
  func.func @transform_4(%arg0: i32) -> (i32, i32) {
    %c0_i32 = arith.constant 0 : i32
    %c0_i32_0 = arith.constant 0 : i32
    %c0_i32_1 = arith.constant 0 : i32
    return %c0_i32, %c0_i32_0 : i32, i32
  }
  func.func @transform_5(%arg0: i32) -> (i32, i32) {
    %c0_i32 = arith.constant 0 : i32
    %c0_i32_0 = arith.constant 0 : i32
    %c0_i32_1 = arith.constant 0 : i32
    return %c0_i32, %c0_i32_0 : i32, i32
  }
  func.func @transform_6(%arg0: i32) -> (i32, i32) {
    %c0_i32 = arith.constant 0 : i32
    %c0_i32_0 = arith.constant 0 : i32
    return %arg0, %c0_i32 : i32, i32
  }
}

module attributes {stable_mosaic.version = 11 : i64} {
  func.func @conformer_conv_kernel(%arg0: i32, %arg1: memref<32x128xf32, #tpu.memory_space<vmem>>, %arg2: memref<3x128xf32, #tpu.memory_space<vmem>>, %arg3: memref<128x128xbf16, #tpu.memory_space<vmem>>, %arg4: memref<128x128xbf16, #tpu.memory_space<vmem>>, %arg5: memref<12x128xf32, #tpu.memory_space<vmem>>, %arg6: memref<128x128xbf16, #tpu.memory_space<vmem>>, %arg7: memref<32x128xf32, #tpu.memory_space<vmem>>) attributes {dimension_semantics = [#tpu.dimension_semantics<parallel>], iteration_bounds = array<i64: 1>, scalar_prefetch = 0 : i64, scratch_operands = 0 : i64, tpu.core_type = #tpu.core_type<tc>, window_params = [{transform_indices = @transform_0, window_bounds = array<i64: 32, 128>}, {pipeline_mode = #tpu.pipeline_mode<synchronous>, transform_indices = @transform_1, window_bounds = array<i64: 3, 128>}, {pipeline_mode = #tpu.pipeline_mode<synchronous>, transform_indices = @transform_2, window_bounds = array<i64: 128, 128>}, {pipeline_mode = #tpu.pipeline_mode<synchronous>, transform_indices = @transform_3, window_bounds = array<i64: 128, 128>}, {pipeline_mode = #tpu.pipeline_mode<synchronous>, transform_indices = @transform_4, window_bounds = array<i64: 12, 128>}, {pipeline_mode = #tpu.pipeline_mode<synchronous>, transform_indices = @transform_5, window_bounds = array<i64: 128, 128>}, {transform_indices = @transform_6, window_bounds = array<i64: 32, 128>}]} {
    %c0 = arith.constant 0 : index
    %c0_0 = arith.constant 0 : index
    %0 = vector.load %arg1[%c0, %c0_0] : memref<32x128xf32, #tpu.memory_space<vmem>>, vector<32x128xf32>
    %cst = arith.constant dense<0.000000e+00> : vector<32xf32>
    %1 = vector.multi_reduction <add>, %0, %cst [1] : vector<32x128xf32> to vector<32xf32>
    %2 = vector.shape_cast %1 : vector<32xf32> to vector<32x1xf32>
    %3 = arith.mulf %0, %0 : vector<32x128xf32>
    %cst_1 = arith.constant dense<0.000000e+00> : vector<32xf32>
    %4 = vector.multi_reduction <add>, %3, %cst_1 [1] : vector<32x128xf32> to vector<32xf32>
    %5 = vector.shape_cast %4 : vector<32xf32> to vector<32x1xf32>
    %cst_2 = arith.constant 3.125000e-02 : f32
    %6 = vector.broadcast %cst_2 : f32 to vector<32x1xf32>
    %7 = arith.mulf %2, %6 : vector<32x1xf32>
    %cst_3 = arith.constant 3.125000e-02 : f32
    %8 = vector.broadcast %cst_3 : f32 to vector<32x1xf32>
    %9 = arith.mulf %5, %8 : vector<32x1xf32>
    %10 = arith.mulf %7, %7 : vector<32x1xf32>
    %11 = arith.subf %9, %10 : vector<32x1xf32>
    %cst_4 = arith.constant 0.000000e+00 : f32
    %12 = vector.broadcast %cst_4 : f32 to vector<32x1xf32>
    %13 = arith.maximumf %11, %12 : vector<32x1xf32>
    %cst_5 = arith.constant 9.99999974E-6 : f32
    %14 = vector.broadcast %cst_5 : f32 to vector<32x1xf32>
    %15 = arith.addf %13, %14 : vector<32x1xf32>
    %16 = math.rsqrt %15 : vector<32x1xf32>
    %c0_6 = arith.constant 0 : index
    %c0_7 = arith.constant 0 : index
    %17 = vector.load %arg2[%c0_6, %c0_7] : memref<3x128xf32, #tpu.memory_space<vmem>>, vector<3x128xf32>
    %18 = vector.extract_strided_slice %17 {offsets = [0, 0], sizes = [1, 128], strides = [1, 1]} : vector<3x128xf32> to vector<1x128xf32>
    %19 = vector.extract_strided_slice %17 {offsets = [1, 0], sizes = [1, 128], strides = [1, 1]} : vector<3x128xf32> to vector<1x128xf32>
    %20 = vector.extract_strided_slice %17 {offsets = [2, 0], sizes = [1, 128], strides = [1, 1]} : vector<3x128xf32> to vector<1x128xf32>
    %21 = vector.broadcast %7 : vector<32x1xf32> to vector<32x128xf32>
    %22 = arith.subf %0, %21 : vector<32x128xf32>
    %23 = vector.broadcast %16 : vector<32x1xf32> to vector<32x128xf32>
    %24 = arith.mulf %22, %23 : vector<32x128xf32>
    %25 = vector.broadcast %18 : vector<1x128xf32> to vector<32x128xf32>
    %26 = arith.mulf %24, %25 : vector<32x128xf32>
    %27 = vector.broadcast %19 : vector<1x128xf32> to vector<32x128xf32>
    %28 = arith.addf %26, %27 : vector<32x128xf32>
    %c0_8 = arith.constant 0 : index
    %c0_9 = arith.constant 0 : index
    %29 = vector.load %arg5[%c0_8, %c0_9] : memref<12x128xf32, #tpu.memory_space<vmem>>, vector<12x128xf32>
    %30 = vector.extract_strided_slice %29 {offsets = [0, 0], sizes = [1, 128], strides = [1, 1]} : vector<12x128xf32> to vector<1x128xf32>
    %31 = vector.extract_strided_slice %29 {offsets = [1, 0], sizes = [1, 128], strides = [1, 1]} : vector<12x128xf32> to vector<1x128xf32>
    %32 = vector.extract_strided_slice %29 {offsets = [2, 0], sizes = [1, 128], strides = [1, 1]} : vector<12x128xf32> to vector<1x128xf32>
    %33 = vector.extract_strided_slice %29 {offsets = [3, 0], sizes = [1, 128], strides = [1, 1]} : vector<12x128xf32> to vector<1x128xf32>
    %34 = vector.extract_strided_slice %29 {offsets = [4, 0], sizes = [1, 128], strides = [1, 1]} : vector<12x128xf32> to vector<1x128xf32>
    %35 = vector.extract_strided_slice %29 {offsets = [5, 0], sizes = [7, 128], strides = [1, 1]} : vector<12x128xf32> to vector<7x128xf32>
    %36 = arith.truncf %28 : vector<32x128xf32> to vector<32x128xbf16>
    %c0_10 = arith.constant 0 : index
    %c0_11 = arith.constant 0 : index
    %37 = vector.load %arg3[%c0_10, %c0_11] : memref<128x128xbf16, #tpu.memory_space<vmem>>, vector<128x128xbf16>
    %cst_12 = arith.constant dense<0.000000e+00> : vector<32x128xf32>
    %38 = tpu.matmul %36, %37, %cst_12 {dimension_numbers = #tpu.dot_dimension_numbers<[1], [0], [0], [1], [0, 0, 1, 1], [], []>} : vector<32x128xbf16>, vector<128x128xbf16>, vector<32x128xf32> -> vector<32x128xf32>
    %39 = vector.broadcast %30 : vector<1x128xf32> to vector<32x128xf32>
    %40 = arith.addf %38, %39 : vector<32x128xf32>
    %c0_13 = arith.constant 0 : index
    %c0_14 = arith.constant 0 : index
    %41 = vector.load %arg4[%c0_13, %c0_14] : memref<128x128xbf16, #tpu.memory_space<vmem>>, vector<128x128xbf16>
    %cst_15 = arith.constant dense<0.000000e+00> : vector<32x128xf32>
    %42 = tpu.matmul %36, %41, %cst_15 {dimension_numbers = #tpu.dot_dimension_numbers<[1], [0], [0], [1], [0, 0, 1, 1], [], []>} : vector<32x128xbf16>, vector<128x128xbf16>, vector<32x128xf32> -> vector<32x128xf32>
    %43 = vector.broadcast %31 : vector<1x128xf32> to vector<32x128xf32>
    %44 = arith.addf %42, %43 : vector<32x128xf32>
    %45 = arith.negf %44 : vector<32x128xf32>
    %46 = math.exp %45 : vector<32x128xf32>
    %cst_16 = arith.constant 1.000000e+00 : f32
    %47 = vector.broadcast %cst_16 : f32 to vector<32x128xf32>
    %48 = arith.addf %47, %46 : vector<32x128xf32>
    %49 = arith.divf %47, %48 : vector<32x128xf32>
    %50 = arith.mulf %40, %49 : vector<32x128xf32>
    %cst_17 = arith.constant 0.000000e+00 : f32
    %51 = vector.broadcast %cst_17 : f32 to vector<8x128xf32>
    %52 = vector.extract_strided_slice %50 {offsets = [0, 0], sizes = [16, 128], strides = [1, 1]} : vector<32x128xf32> to vector<16x128xf32>
    %53 = tpu.concatenate %51, %52, %51 in 0 : vector<8x128xf32>, vector<16x128xf32>, vector<8x128xf32> -> vector<32x128xf32>
    %54 = vector.extract_strided_slice %53 {offsets = [5, 0], sizes = [16, 128], strides = [1, 1]} : vector<32x128xf32> to vector<16x128xf32>
    %55 = vector.extract_strided_slice %35 {offsets = [0, 0], sizes = [1, 128], strides = [1, 1]} : vector<7x128xf32> to vector<1x128xf32>
    %56 = vector.broadcast %55 : vector<1x128xf32> to vector<16x128xf32>
    %57 = arith.mulf %54, %56 : vector<16x128xf32>
    %58 = vector.extract_strided_slice %53 {offsets = [6, 0], sizes = [16, 128], strides = [1, 1]} : vector<32x128xf32> to vector<16x128xf32>
    %59 = vector.extract_strided_slice %35 {offsets = [1, 0], sizes = [1, 128], strides = [1, 1]} : vector<7x128xf32> to vector<1x128xf32>
    %60 = vector.broadcast %59 : vector<1x128xf32> to vector<16x128xf32>
    %61 = arith.mulf %58, %60 : vector<16x128xf32>
    %62 = arith.addf %57, %61 : vector<16x128xf32>
    %63 = vector.extract_strided_slice %53 {offsets = [7, 0], sizes = [16, 128], strides = [1, 1]} : vector<32x128xf32> to vector<16x128xf32>
    %64 = vector.extract_strided_slice %35 {offsets = [2, 0], sizes = [1, 128], strides = [1, 1]} : vector<7x128xf32> to vector<1x128xf32>
    %65 = vector.broadcast %64 : vector<1x128xf32> to vector<16x128xf32>
    %66 = arith.mulf %63, %65 : vector<16x128xf32>
    %67 = arith.addf %62, %66 : vector<16x128xf32>
    %68 = vector.extract_strided_slice %53 {offsets = [8, 0], sizes = [16, 128], strides = [1, 1]} : vector<32x128xf32> to vector<16x128xf32>
    %69 = vector.extract_strided_slice %35 {offsets = [3, 0], sizes = [1, 128], strides = [1, 1]} : vector<7x128xf32> to vector<1x128xf32>
    %70 = vector.broadcast %69 : vector<1x128xf32> to vector<16x128xf32>
    %71 = arith.mulf %68, %70 : vector<16x128xf32>
    %72 = arith.addf %67, %71 : vector<16x128xf32>
    %73 = vector.extract_strided_slice %53 {offsets = [9, 0], sizes = [16, 128], strides = [1, 1]} : vector<32x128xf32> to vector<16x128xf32>
    %74 = vector.extract_strided_slice %35 {offsets = [4, 0], sizes = [1, 128], strides = [1, 1]} : vector<7x128xf32> to vector<1x128xf32>
    %75 = vector.broadcast %74 : vector<1x128xf32> to vector<16x128xf32>
    %76 = arith.mulf %73, %75 : vector<16x128xf32>
    %77 = arith.addf %72, %76 : vector<16x128xf32>
    %78 = vector.extract_strided_slice %53 {offsets = [10, 0], sizes = [16, 128], strides = [1, 1]} : vector<32x128xf32> to vector<16x128xf32>
    %79 = vector.extract_strided_slice %35 {offsets = [5, 0], sizes = [1, 128], strides = [1, 1]} : vector<7x128xf32> to vector<1x128xf32>
    %80 = vector.broadcast %79 : vector<1x128xf32> to vector<16x128xf32>
    %81 = arith.mulf %78, %80 : vector<16x128xf32>
    %82 = arith.addf %77, %81 : vector<16x128xf32>
    %83 = vector.extract_strided_slice %53 {offsets = [11, 0], sizes = [16, 128], strides = [1, 1]} : vector<32x128xf32> to vector<16x128xf32>
    %84 = vector.extract_strided_slice %35 {offsets = [6, 0], sizes = [1, 128], strides = [1, 1]} : vector<7x128xf32> to vector<1x128xf32>
    %85 = vector.broadcast %84 : vector<1x128xf32> to vector<16x128xf32>
    %86 = arith.mulf %83, %85 : vector<16x128xf32>
    %87 = arith.addf %82, %86 : vector<16x128xf32>
    %88 = vector.broadcast %32 : vector<1x128xf32> to vector<16x128xf32>
    %89 = arith.addf %87, %88 : vector<16x128xf32>
    %90 = vector.shape_cast %89 : vector<16x128xf32> to vector<1x16x128xf32>
    %cst_18 = arith.constant dense<0.000000e+00> : vector<1xf32>
    %91 = vector.multi_reduction <add>, %90, %cst_18 [1, 2] : vector<1x16x128xf32> to vector<1xf32>
    %92 = vector.shape_cast %91 : vector<1xf32> to vector<1x1x1xf32>
    %93 = vector.extract %92[0, 0, 0] : f32 from vector<1x1x1xf32>
    %94 = arith.mulf %89, %89 : vector<16x128xf32>
    %95 = vector.shape_cast %94 : vector<16x128xf32> to vector<1x16x128xf32>
    %cst_19 = arith.constant dense<0.000000e+00> : vector<1xf32>
    %96 = vector.multi_reduction <add>, %95, %cst_19 [1, 2] : vector<1x16x128xf32> to vector<1xf32>
    %97 = vector.shape_cast %96 : vector<1xf32> to vector<1x1x1xf32>
    %98 = vector.extract %97[0, 0, 0] : f32 from vector<1x1x1xf32>
    %cst_20 = arith.constant 9.765625E-4 : f32
    %99 = arith.mulf %93, %cst_20 : f32
    %cst_21 = arith.constant 9.765625E-4 : f32
    %100 = arith.mulf %98, %cst_21 : f32
    %101 = arith.mulf %99, %99 : f32
    %102 = arith.subf %100, %101 : f32
    %cst_22 = arith.constant 0.000000e+00 : f32
    %103 = arith.maximumf %102, %cst_22 : f32
    %cst_23 = arith.constant 9.99999974E-6 : f32
    %104 = arith.addf %103, %cst_23 : f32
    %105 = math.rsqrt %104 : f32
    %106 = vector.broadcast %105 : f32 to vector<1x128xf32>
    %107 = arith.mulf %33, %106 : vector<1x128xf32>
    %108 = vector.broadcast %99 : f32 to vector<1x128xf32>
    %109 = arith.mulf %108, %107 : vector<1x128xf32>
    %110 = arith.subf %34, %109 : vector<1x128xf32>
    %111 = vector.broadcast %107 : vector<1x128xf32> to vector<16x128xf32>
    %112 = arith.mulf %89, %111 : vector<16x128xf32>
    %113 = vector.broadcast %110 : vector<1x128xf32> to vector<16x128xf32>
    %114 = arith.addf %112, %113 : vector<16x128xf32>
    %cst_24 = arith.constant 0.000000e+00 : f32
    %115 = vector.broadcast %cst_24 : f32 to vector<16x128xf32>
    %116 = arith.cmpf oge, %114, %115 : vector<16x128xf32>
    %cst_25 = arith.constant 3.000000e-01 : f32
    %117 = vector.broadcast %cst_25 : f32 to vector<16x128xf32>
    %118 = arith.mulf %117, %114 : vector<16x128xf32>
    %119 = arith.select %116, %114, %118 : vector<16x128xi1>, vector<16x128xf32>
    %120 = vector.extract_strided_slice %50 {offsets = [16, 0], sizes = [16, 128], strides = [1, 1]} : vector<32x128xf32> to vector<16x128xf32>
    %121 = tpu.concatenate %51, %120, %51 in 0 : vector<8x128xf32>, vector<16x128xf32>, vector<8x128xf32> -> vector<32x128xf32>
    %122 = vector.extract_strided_slice %121 {offsets = [5, 0], sizes = [16, 128], strides = [1, 1]} : vector<32x128xf32> to vector<16x128xf32>
    %123 = vector.extract_strided_slice %35 {offsets = [0, 0], sizes = [1, 128], strides = [1, 1]} : vector<7x128xf32> to vector<1x128xf32>
    %124 = vector.broadcast %123 : vector<1x128xf32> to vector<16x128xf32>
    %125 = arith.mulf %122, %124 : vector<16x128xf32>
    %126 = vector.extract_strided_slice %121 {offsets = [6, 0], sizes = [16, 128], strides = [1, 1]} : vector<32x128xf32> to vector<16x128xf32>
    %127 = vector.extract_strided_slice %35 {offsets = [1, 0], sizes = [1, 128], strides = [1, 1]} : vector<7x128xf32> to vector<1x128xf32>
    %128 = vector.broadcast %127 : vector<1x128xf32> to vector<16x128xf32>
    %129 = arith.mulf %126, %128 : vector<16x128xf32>
    %130 = arith.addf %125, %129 : vector<16x128xf32>
    %131 = vector.extract_strided_slice %121 {offsets = [7, 0], sizes = [16, 128], strides = [1, 1]} : vector<32x128xf32> to vector<16x128xf32>
    %132 = vector.extract_strided_slice %35 {offsets = [2, 0], sizes = [1, 128], strides = [1, 1]} : vector<7x128xf32> to vector<1x128xf32>
    %133 = vector.broadcast %132 : vector<1x128xf32> to vector<16x128xf32>
    %134 = arith.mulf %131, %133 : vector<16x128xf32>
    %135 = arith.addf %130, %134 : vector<16x128xf32>
    %136 = vector.extract_strided_slice %121 {offsets = [8, 0], sizes = [16, 128], strides = [1, 1]} : vector<32x128xf32> to vector<16x128xf32>
    %137 = vector.extract_strided_slice %35 {offsets = [3, 0], sizes = [1, 128], strides = [1, 1]} : vector<7x128xf32> to vector<1x128xf32>
    %138 = vector.broadcast %137 : vector<1x128xf32> to vector<16x128xf32>
    %139 = arith.mulf %136, %138 : vector<16x128xf32>
    %140 = arith.addf %135, %139 : vector<16x128xf32>
    %141 = vector.extract_strided_slice %121 {offsets = [9, 0], sizes = [16, 128], strides = [1, 1]} : vector<32x128xf32> to vector<16x128xf32>
    %142 = vector.extract_strided_slice %35 {offsets = [4, 0], sizes = [1, 128], strides = [1, 1]} : vector<7x128xf32> to vector<1x128xf32>
    %143 = vector.broadcast %142 : vector<1x128xf32> to vector<16x128xf32>
    %144 = arith.mulf %141, %143 : vector<16x128xf32>
    %145 = arith.addf %140, %144 : vector<16x128xf32>
    %146 = vector.extract_strided_slice %121 {offsets = [10, 0], sizes = [16, 128], strides = [1, 1]} : vector<32x128xf32> to vector<16x128xf32>
    %147 = vector.extract_strided_slice %35 {offsets = [5, 0], sizes = [1, 128], strides = [1, 1]} : vector<7x128xf32> to vector<1x128xf32>
    %148 = vector.broadcast %147 : vector<1x128xf32> to vector<16x128xf32>
    %149 = arith.mulf %146, %148 : vector<16x128xf32>
    %150 = arith.addf %145, %149 : vector<16x128xf32>
    %151 = vector.extract_strided_slice %121 {offsets = [11, 0], sizes = [16, 128], strides = [1, 1]} : vector<32x128xf32> to vector<16x128xf32>
    %152 = vector.extract_strided_slice %35 {offsets = [6, 0], sizes = [1, 128], strides = [1, 1]} : vector<7x128xf32> to vector<1x128xf32>
    %153 = vector.broadcast %152 : vector<1x128xf32> to vector<16x128xf32>
    %154 = arith.mulf %151, %153 : vector<16x128xf32>
    %155 = arith.addf %150, %154 : vector<16x128xf32>
    %156 = vector.broadcast %32 : vector<1x128xf32> to vector<16x128xf32>
    %157 = arith.addf %155, %156 : vector<16x128xf32>
    %158 = vector.shape_cast %157 : vector<16x128xf32> to vector<1x16x128xf32>
    %cst_26 = arith.constant dense<0.000000e+00> : vector<1xf32>
    %159 = vector.multi_reduction <add>, %158, %cst_26 [1, 2] : vector<1x16x128xf32> to vector<1xf32>
    %160 = vector.shape_cast %159 : vector<1xf32> to vector<1x1x1xf32>
    %161 = vector.extract %160[0, 0, 0] : f32 from vector<1x1x1xf32>
    %162 = arith.mulf %157, %157 : vector<16x128xf32>
    %163 = vector.shape_cast %162 : vector<16x128xf32> to vector<1x16x128xf32>
    %cst_27 = arith.constant dense<0.000000e+00> : vector<1xf32>
    %164 = vector.multi_reduction <add>, %163, %cst_27 [1, 2] : vector<1x16x128xf32> to vector<1xf32>
    %165 = vector.shape_cast %164 : vector<1xf32> to vector<1x1x1xf32>
    %166 = vector.extract %165[0, 0, 0] : f32 from vector<1x1x1xf32>
    %cst_28 = arith.constant 9.765625E-4 : f32
    %167 = arith.mulf %161, %cst_28 : f32
    %cst_29 = arith.constant 9.765625E-4 : f32
    %168 = arith.mulf %166, %cst_29 : f32
    %169 = arith.mulf %167, %167 : f32
    %170 = arith.subf %168, %169 : f32
    %cst_30 = arith.constant 0.000000e+00 : f32
    %171 = arith.maximumf %170, %cst_30 : f32
    %cst_31 = arith.constant 9.99999974E-6 : f32
    %172 = arith.addf %171, %cst_31 : f32
    %173 = math.rsqrt %172 : f32
    %174 = vector.broadcast %173 : f32 to vector<1x128xf32>
    %175 = arith.mulf %33, %174 : vector<1x128xf32>
    %176 = vector.broadcast %167 : f32 to vector<1x128xf32>
    %177 = arith.mulf %176, %175 : vector<1x128xf32>
    %178 = arith.subf %34, %177 : vector<1x128xf32>
    %179 = vector.broadcast %175 : vector<1x128xf32> to vector<16x128xf32>
    %180 = arith.mulf %157, %179 : vector<16x128xf32>
    %181 = vector.broadcast %178 : vector<1x128xf32> to vector<16x128xf32>
    %182 = arith.addf %180, %181 : vector<16x128xf32>
    %cst_32 = arith.constant 0.000000e+00 : f32
    %183 = vector.broadcast %cst_32 : f32 to vector<16x128xf32>
    %184 = arith.cmpf oge, %182, %183 : vector<16x128xf32>
    %cst_33 = arith.constant 3.000000e-01 : f32
    %185 = vector.broadcast %cst_33 : f32 to vector<16x128xf32>
    %186 = arith.mulf %185, %182 : vector<16x128xf32>
    %187 = arith.select %184, %182, %186 : vector<16x128xi1>, vector<16x128xf32>
    %188 = tpu.concatenate %119, %187 in 0 : vector<16x128xf32>, vector<16x128xf32> -> vector<32x128xf32>
    %189 = arith.truncf %188 : vector<32x128xf32> to vector<32x128xbf16>
    %c0_34 = arith.constant 0 : index
    %c0_35 = arith.constant 0 : index
    %190 = vector.load %arg6[%c0_34, %c0_35] : memref<128x128xbf16, #tpu.memory_space<vmem>>, vector<128x128xbf16>
    %cst_36 = arith.constant dense<0.000000e+00> : vector<32x128xf32>
    %191 = tpu.matmul %189, %190, %cst_36 {dimension_numbers = #tpu.dot_dimension_numbers<[1], [0], [0], [1], [0, 0, 1, 1], [], []>} : vector<32x128xbf16>, vector<128x128xbf16>, vector<32x128xf32> -> vector<32x128xf32>
    %192 = vector.broadcast %20 : vector<1x128xf32> to vector<32x128xf32>
    %193 = arith.addf %191, %192 : vector<32x128xf32>
    %c0_37 = arith.constant 0 : index
    %c0_38 = arith.constant 0 : index
    %194 = vector.load %arg7[%c0_37, %c0_38] : memref<32x128xf32, #tpu.memory_space<vmem>>, vector<32x128xf32>
    tpu.vector_store %arg7[%c0_37, %c0_38], %193 {strides = array<i32>} : memref<32x128xf32, #tpu.memory_space<vmem>>, vector<32x128xf32>,
    return
  }
  func.func @transform_0(%arg0: i32) -> (i32, i32) {
    %c0_i32 = arith.constant 0 : i32
    %c0_i32_0 = arith.constant 0 : i32
    return %arg0, %c0_i32 : i32, i32
  }
  func.func @transform_1(%arg0: i32) -> (i32, i32) {
    %c0_i32 = arith.constant 0 : i32
    %c0_i32_0 = arith.constant 0 : i32
    %c0_i32_1 = arith.constant 0 : i32
    return %c0_i32, %c0_i32_0 : i32, i32
  }
  func.func @transform_2(%arg0: i32) -> (i32, i32) {
    %c0_i32 = arith.constant 0 : i32
    %c0_i32_0 = arith.constant 0 : i32
    %c0_i32_1 = arith.constant 0 : i32
    return %c0_i32, %c0_i32_0 : i32, i32
  }
  func.func @transform_3(%arg0: i32) -> (i32, i32) {
    %c0_i32 = arith.constant 0 : i32
    %c0_i32_0 = arith.constant 0 : i32
    %c0_i32_1 = arith.constant 0 : i32
    return %c0_i32, %c0_i32_0 : i32, i32
  }
  func.func @transform_4(%arg0: i32) -> (i32, i32) {
    %c0_i32 = arith.constant 0 : i32
    %c0_i32_0 = arith.constant 0 : i32
    %c0_i32_1 = arith.constant 0 : i32
    return %c0_i32, %c0_i32_0 : i32, i32
  }
  func.func @transform_5(%arg0: i32) -> (i32, i32) {
    %c0_i32 = arith.constant 0 : i32
    %c0_i32_0 = arith.constant 0 : i32
    %c0_i32_1 = arith.constant 0 : i32
    return %c0_i32, %c0_i32_0 : i32, i32
  }
  func.func @transform_6(%arg0: i32) -> (i32, i32) {
    %c0_i32 = arith.constant 0 : i32
    %c0_i32_0 = arith.constant 0 : i32
    return %arg0, %c0_i32 : i32, i32
  }
}

</mosaic_0001>

<llo_original>
// kernel: tpu_custom_call.1
$region0: #{tpu_custom_call.1}
  #allocation0 [shape = 'u32[]', space=smem, size = 0x4, offset = 0x4, fixed_abs, tag = 'smem constant byte address 0x4 - core index']
  #allocation1 [shape = 'u32[72,128]{1,0:T(1,128)}', space=vmem, size = 0x9000, scoped, tag = 'internal scratch']
  %s0 = inlined_call_operand.hbm [shape: f32[32,128], index: 0, kind: input, shape index: {}]
  %s1 = inlined_call_operand.hbm [shape: f32[3,128], index: 1, kind: input, shape index: {}]
  %s2 = inlined_call_operand.hbm [shape: bf16[128,128], index: 2, kind: input, shape index: {}]
  %s3 = inlined_call_operand.hbm [shape: bf16[128,128], index: 3, kind: input, shape index: {}]
  %s4 = inlined_call_operand.hbm [shape: f32[12,128], index: 4, kind: input, shape index: {}]
  %s5 = inlined_call_operand.hbm [shape: bf16[128,128], index: 5, kind: input, shape index: {}]
  %s6 = inlined_call_operand.hbm [shape: f32[32,128], index: 6, kind: output, shape index: {}]
  %s7 = sld [smem:[#allocation0]]
  $region58: #{tpu_custom_call.1} parent=0
    _
  %s9 = ssub.s32 1, %s7
  %s10 = scalar_select 0, %s9, %s7
  $region1: #{tpu_custom_call.1} parent=0
    #allocation2 [shape = 'u8[16384]{0}', space=vmem, size = 0x4000, scoped, tag = 'input window, operand 0, single buffered']
    #allocation3 [shape = 's32[1]{0}', space=sflag, size = 0x4, scoped, tag = 'scoped memory for tpu_custom_call.1']
    #allocation4 [shape = 's32[1]{0}', space=sflag, size = 0x4, scoped, tag = 'scoped memory for tpu_custom_call.1']
    #allocation5 [shape = 'u8[2048]{0}', space=vmem, size = 0x800, scoped, tag = 'input window, operand 1, single buffered']
    #allocation6 [shape = 's32[1]{0}', space=sflag, size = 0x4, scoped, tag = 'scoped memory for tpu_custom_call.1']
    #allocation7 [shape = 'u8[32768]{0}', space=vmem, size = 0x8000, scoped, tag = 'input window, operand 2, single buffered']
    #allocation8 [shape = 'u8[32768]{0}', space=vmem, size = 0x8000, scoped, tag = 'input window, operand 3, single buffered']
    #allocation9 [shape = 's32[1]{0}', space=sflag, size = 0x4, scoped, tag = 'scoped memory for tpu_custom_call.1']
    #allocation10 [shape = 'u8[8192]{0}', space=vmem, size = 0x2000, scoped, tag = 'input window, operand 4, single buffered']
    #allocation11 [shape = 'u8[32768]{0}', space=vmem, size = 0x8000, scoped, tag = 'input window, operand 5, single buffered']
    #allocation12 [shape = 's32[1]{0}', space=sflag, size = 0x4, scoped, tag = 'scoped memory for tpu_custom_call.1']
    #allocation13 [shape = 'u8[16384]{0}', space=vmem, size = 0x4000, scoped, tag = 'output window, operand 0, single buffered']
    %11 = vsyncpa [#allocation3], 0
    %12 = vsyncpa [#allocation6], 0
    %13 = vsyncpa [#allocation9], 0
    %14 = vsyncpa [#allocation12], 0
    %15 = vsyncpa [#allocation4], 0
    // Predicated region
    $region2: #{tpu_custom_call.1} parent=1 // pred_check
      _
    $region3: #{tpu_custom_call.1} parent=1 // pred_check_branch
      %17 = sbr.rel (0) target = $region5
    $region4: #{tpu_custom_call.1} parent=1 // pred_region
      %19 = vsyncadd [#allocation3], 0
      %s20 = sshll.u32 %s0, 4
      %s21 = int_to_ptr.hbm [resolvable:$true] %s20
      %s22 = sshll.u32 [#allocation2], 4
      %s23 = int_to_ptr.vmem [resolvable:$true] %s22
      %28 = dma.hbm_to_vmem [thread:$0]  %s21, 512, %s23, [#allocation3], 128, 128, 8
    $region5: #{tpu_custom_call.1} parent=1 // pred_fallthru
      _
    // Predicated region
    $region6: #{tpu_custom_call.1} parent=1 // pred_check
      _
    $region7: #{tpu_custom_call.1} parent=1 // pred_check_branch
      %30 = sbr.rel (0) target = $region9
    $region8: #{tpu_custom_call.1} parent=1 // pred_region
      %32 = vsyncadd [#allocation6], 0
      %s34 = sshll.u32 %s1, 4
      %s35 = int_to_ptr.hbm [resolvable:$true] %s34
      %s36 = sshll.u32 [#allocation5], 4
      %s37 = int_to_ptr.vmem [resolvable:$true] %s36
      %39 = dma.hbm_to_vmem [thread:$0]  %s35, 64, %s37, [#allocation6]
    $region9: #{tpu_custom_call.1} parent=1 // pred_fallthru
      _
    // Predicated region
    $region10: #{tpu_custom_call.1} parent=1 // pred_check
      _
    $region11: #{tpu_custom_call.1} parent=1 // pred_check_branch
      %41 = sbr.rel (0) target = $region13
    $region12: #{tpu_custom_call.1} parent=1 // pred_region
      %43 = vsyncadd [#allocation6], 0
      %s44 = sshll.u32 %s2, 4
      %s45 = int_to_ptr.hbm [resolvable:$true] %s44
      %s46 = sshll.u32 [#allocation7], 4
      %s47 = int_to_ptr.vmem [resolvable:$true] %s46
      %52 = dma.hbm_to_vmem [thread:$0]  %s45, 1024, %s47, [#allocation6], 64, 64, 4
    $region13: #{tpu_custom_call.1} parent=1 // pred_fallthru
      _
    // Predicated region
    $region14: #{tpu_custom_call.1} parent=1 // pred_check
      _
    $region15: #{tpu_custom_call.1} parent=1 // pred_check_branch
      %54 = sbr.rel (0) target = $region17
    $region16: #{tpu_custom_call.1} parent=1 // pred_region
      %56 = vsyncadd [#allocation9], 0
      %s57 = sshll.u32 %s3, 4
      %s58 = int_to_ptr.hbm [resolvable:$true] %s57
      %s59 = sshll.u32 [#allocation8], 4
      %s60 = int_to_ptr.vmem [resolvable:$true] %s59
      %65 = dma.hbm_to_vmem [thread:$0]  %s58, 1024, %s60, [#allocation9], 64, 64, 4
    $region17: #{tpu_custom_call.1} parent=1 // pred_fallthru
      _
    // Predicated region
    $region18: #{tpu_custom_call.1} parent=1 // pred_check
      _
    $region19: #{tpu_custom_call.1} parent=1 // pred_check_branch
      %67 = sbr.rel (0) target = $region21
    $region20: #{tpu_custom_call.1} parent=1 // pred_region
      %69 = vsyncadd [#allocation9], 0
      %s70 = sshll.u32 %s4, 4
      %s71 = int_to_ptr.hbm [resolvable:$true] %s70
      %s72 = sshll.u32 [#allocation10], 4
      %s73 = int_to_ptr.vmem [resolvable:$true] %s72
      %78 = dma.hbm_to_vmem [thread:$0]  %s71, 256, %s73, [#allocation9], 128, 128, 8
    $region21: #{tpu_custom_call.1} parent=1 // pred_fallthru
      _
    // Predicated region
    $region22: #{tpu_custom_call.1} parent=1 // pred_check
      _
    $region23: #{tpu_custom_call.1} parent=1 // pred_check_branch
      %80 = sbr.rel (0) target = $region25
    $region24: #{tpu_custom_call.1} parent=1 // pred_region
      %82 = vsyncadd [#allocation12], 0
      %s83 = sshll.u32 %s5, 4
      %s84 = int_to_ptr.hbm [resolvable:$true] %s83
      %s85 = sshll.u32 [#allocation11], 4
      %s86 = int_to_ptr.vmem [resolvable:$true] %s85
      %91 = dma.hbm_to_vmem [thread:$0]  %s84, 1024, %s86, [#allocation12], 64, 64, 4
    $region25: #{tpu_custom_call.1} parent=1 // pred_fallthru
      _
    // Predicated region
    $region26: #{tpu_custom_call.1} parent=1 // pred_check
      _
    $region27: #{tpu_custom_call.1} parent=1 // pred_check_branch
      %93 = sbr.rel (0) target = $region29
    $region28: #{tpu_custom_call.1} parent=1 // pred_region
      %95 = dma.done [#allocation3], 512
    $region29: #{tpu_custom_call.1} parent=1 // pred_fallthru
      _
    // Predicated region
    $region30: #{tpu_custom_call.1} parent=1 // pred_check
      _
    $region31: #{tpu_custom_call.1} parent=1 // pred_check_branch
      %97 = sbr.rel (0) target = $region33
    $region32: #{tpu_custom_call.1} parent=1 // pred_region
      %99 = dma.done [#allocation6], 64
    $region33: #{tpu_custom_call.1} parent=1 // pred_fallthru
      _
    // Predicated region
    $region34: #{tpu_custom_call.1} parent=1 // pred_check
      _
    $region35: #{tpu_custom_call.1} parent=1 // pred_check_branch
      %101 = sbr.rel (0) target = $region37
    $region36: #{tpu_custom_call.1} parent=1 // pred_region
      %103 = dma.done [#allocation6], 1024
    $region37: #{tpu_custom_call.1} parent=1 // pred_fallthru
      _
    // Predicated region
    $region38: #{tpu_custom_call.1} parent=1 // pred_check
      _
    $region39: #{tpu_custom_call.1} parent=1 // pred_check_branch
      %105 = sbr.rel (0) target = $region41
    $region40: #{tpu_custom_call.1} parent=1 // pred_region
      %107 = dma.done [#allocation9], 1024
    $region41: #{tpu_custom_call.1} parent=1 // pred_fallthru
      _
    // Predicated region
    $region42: #{tpu_custom_call.1} parent=1 // pred_check
      _
    $region43: #{tpu_custom_call.1} parent=1 // pred_check_branch
      %109 = sbr.rel (0) target = $region45
    $region44: #{tpu_custom_call.1} parent=1 // pred_region
      %111 = dma.done [#allocation9], 256
    $region45: #{tpu_custom_call.1} parent=1 // pred_fallthru
      _
    // Predicated region
    $region46: #{tpu_custom_call.1} parent=1 // pred_check
      _
    $region47: #{tpu_custom_call.1} parent=1 // pred_check_branch
      %113 = sbr.rel (0) target = $region49
    $region48: #{tpu_custom_call.1} parent=1 // pred_region
      %115 = dma.done [#allocation12], 1024
    $region49: #{tpu_custom_call.1} parent=1 // pred_fallthru
      _
    %v116 = vld [vmem:[#allocation2] sm:$0xff]
    %v117 = vld [vmem:[#allocation2 + $0x8] sm:$0xff]
    %v118 = vld [vmem:[#allocation2 + $0x10] sm:$0xff]
    %v119 = vld [vmem:[#allocation2 + $0x18] sm:$0xff]
    %120 = vadd.xlane.f32.xlu0 %v116
    %v121 = vpop.xlane.xlu0 %120
    %122 = vadd.xlane.f32.xlu0 %v117
    %v123 = vpop.xlane.xlu0 %122
    %124 = vadd.xlane.f32.xlu0 %v118
    %v125 = vpop.xlane.xlu0 %124
    %126 = vadd.xlane.f32.xlu0 %v119
    %v127 = vpop.xlane.xlu0 %126
    %v128 = vmul.f32 %v116, %v116
    %v129 = vmul.f32 %v117, %v117
    %v130 = vmul.f32 %v118, %v118
    %v131 = vmul.f32 %v119, %v119
    %132 = vadd.xlane.f32.xlu0 %v128
    %v133 = vpop.xlane.xlu0 %132
    %134 = vadd.xlane.f32.xlu0 %v129
    %v135 = vpop.xlane.xlu0 %134
    %136 = vadd.xlane.f32.xlu0 %v130
    %v137 = vpop.xlane.xlu0 %136
    %138 = vadd.xlane.f32.xlu0 %v131
    %v139 = vpop.xlane.xlu0 %138
    %v140 = vmul.f32 %v121, 0.03125
    %v141 = vmul.f32 %v123, 0.03125
    %v142 = vmul.f32 %v125, 0.03125
    %v143 = vmul.f32 %v127, 0.03125
    %v144 = vmul.f32 %v133, 0.03125
    %v145 = vmul.f32 %v135, 0.03125
    %v146 = vmul.f32 %v137, 0.03125
    %v147 = vmul.f32 %v139, 0.03125
    %v148 = vmul.f32 %v140, %v140
    %v149 = vmul.f32 %v141, %v141
    %v150 = vmul.f32 %v142, %v142
    %v151 = vmul.f32 %v143, %v143
    %v152 = vsub.f32 %v144, %v148
    %v153 = vsub.f32 %v145, %v149
    %v154 = vsub.f32 %v146, %v150
    %v155 = vsub.f32 %v147, %v151
    %v156 = vmax.f32 %v152, 0.0
    %v157 = vmax.f32 %v153, 0.0
    %v158 = vmax.f32 %v154, 0.0
    %v159 = vmax.f32 %v155, 0.0
    %v160 = vadd.f32 %v156, 1e-05
    %v161 = vadd.f32 %v157, 1e-05
    %v162 = vadd.f32 %v158, 1e-05
    %v163 = vadd.f32 %v159, 1e-05
    %v164 = vrsqrt.pop %v160
    %v165 = vmul.f32 %v164, %v160
    %v166 = vmul.f32 %v165, %v164
    %v167 = vmul.f32 0.5, %v166
    %v168 = vsub.f32 1.5, %v167
    %v169 = vmul.f32 %v164, %v168
    %vm170 = vweird.f32 %v160
    %vm171 = vweird.f32 %v164
    %vm172 = vmor %vm170, %vm171
    %v173 = vsel %vm172, %v164, %v169
    %v174 = vrsqrt.pop %v161
    %v175 = vmul.f32 %v174, %v161
    %v176 = vmul.f32 %v175, %v174
    %v177 = vmul.f32 0.5, %v176
    %v178 = vsub.f32 1.5, %v177
    %v179 = vmul.f32 %v174, %v178
    %vm180 = vweird.f32 %v161
    %vm181 = vweird.f32 %v174
    %vm182 = vmor %vm180, %vm181
    %v183 = vsel %vm182, %v174, %v179
    %v184 = vrsqrt.pop %v162
    %v185 = vmul.f32 %v184, %v162
    %v186 = vmul.f32 %v185, %v184
    %v187 = vmul.f32 0.5, %v186
    %v188 = vsub.f32 1.5, %v187
    %v189 = vmul.f32 %v184, %v188
    %vm190 = vweird.f32 %v162
    %vm191 = vweird.f32 %v184
    %vm192 = vmor %vm190, %vm191
    %v193 = vsel %vm192, %v184, %v189
    %v194 = vrsqrt.pop %v163
    %v195 = vmul.f32 %v194, %v163
    %v196 = vmul.f32 %v195, %v194
    %v197 = vmul.f32 0.5, %v196
    %v198 = vsub.f32 1.5, %v197
    %v199 = vmul.f32 %v194, %v198
    %vm200 = vweird.f32 %v163
    %vm201 = vweird.f32 %v194
    %vm202 = vmor %vm200, %vm201
    %v203 = vsel %vm202, %v194, %v199
    %v204 = vld [vmem:[#allocation5] sm:$0x7]
    %v205 = vsub.f32 %v116, %v140
    %v206 = vsub.f32 %v117, %v141
    %v207 = vsub.f32 %v118, %v142
    %v208 = vsub.f32 %v119, %v143
    %v209 = vmul.f32 %v205, %v173
    %v210 = vmul.f32 %v206, %v183
    %v211 = vmul.f32 %v207, %v193
    %v212 = vmul.f32 %v208, %v203
    %v213 = vperm.slane %v204, 0
    %v214 = vmul.f32 %v209, %v213
    %v215 = vmul.f32 %v210, %v213
    %v216 = vmul.f32 %v211, %v213
    %v217 = vmul.f32 %v212, %v213
    %v218 = vperm.slane %v204, 1
    %v219 = vadd.f32 %v214, %v218
    %v220 = vadd.f32 %v215, %v218
    %v221 = vadd.f32 %v216, %v218
    %v222 = vadd.f32 %v217, %v218
    %v223 = vld [vmem:[#allocation10] sm:$0xff]
    %v224 = vld [vmem:[#allocation10 + $0x8] sm:$0xf]
    %v225 = vpack.c.bf16 %v220, %v219
    %v226 = vpack.c.bf16 %v222, %v221
    %v227 = vld [vmem:[#allocation7] sm:$0xf]
    %v228 = vld [vmem:[#allocation7 + $0x4] sm:$0xf]
    %v229 = vld [vmem:[#allocation7 + $0x8] sm:$0xf]
    %v230 = vld [vmem:[#allocation7 + $0xc] sm:$0xf]
    %v231 = vld [vmem:[#allocation7 + $0x10] sm:$0xf]
    %v232 = vld [vmem:[#allocation7 + $0x14] sm:$0xf]
    %v233 = vld [vmem:[#allocation7 + $0x18] sm:$0xf]
    %v234 = vld [vmem:[#allocation7 + $0x1c] sm:$0xf]
    %v235 = vld [vmem:[#allocation7 + $0x20] sm:$0xf]
    %v236 = vld [vmem:[#allocation7 + $0x24] sm:$0xf]
    %v237 = vld [vmem:[#allocation7 + $0x28] sm:$0xf]
    %v238 = vld [vmem:[#allocation7 + $0x2c] sm:$0xf]
    %v239 = vld [vmem:[#allocation7 + $0x30] sm:$0xf]
    %v240 = vld [vmem:[#allocation7 + $0x34] sm:$0xf]
    %v241 = vld [vmem:[#allocation7 + $0x38] sm:$0xf]
    %v242 = vld [vmem:[#allocation7 + $0x3c] sm:$0xf]
    %v243 = vperm.slane %v223, 0
    %v260 = vunpack.c.l.b16 %v227
    %v261 = vunpack.c.l.b16 %v228
    %v262 = vunpack.c.l.b16 %v229
    %v263 = vunpack.c.l.b16 %v230
    %v264 = vunpack.c.l.b16 %v231
    %v265 = vunpack.c.l.b16 %v232
    %v266 = vunpack.c.l.b16 %v233
    %v267 = vunpack.c.l.b16 %v234
    %v268 = vunpack.c.l.b16 %v235
    %v269 = vunpack.c.l.b16 %v236
    %v270 = vunpack.c.l.b16 %v237
    %v271 = vunpack.c.l.b16 %v238
    %v272 = vunpack.c.l.b16 %v239
    %v273 = vunpack.c.l.b16 %v240
    %v274 = vunpack.c.l.b16 %v241
    %v275 = vunpack.c.l.b16 %v242
    %v276 = vpack.c.b16 %v261, %v260
    %v277 = vpack.c.b16 %v263, %v262
    %v278 = vpack.c.b16 %v265, %v264
    %v279 = vpack.c.b16 %v267, %v266
    %v280 = vpack.c.b16 %v269, %v268
    %v281 = vpack.c.b16 %v271, %v270
    %v282 = vpack.c.b16 %v273, %v272
    %v283 = vpack.c.b16 %v275, %v274
    %292 = vmatpush.bf16.msra.mxu0 %v283
    %293 = vmatpush.bf16.msra.mxu0 %v282
    %294 = vmatpush.bf16.msra.mxu0 %v281
    %295 = vmatpush.bf16.msra.mxu0 %v280
    %296 = vmatpush.bf16.msra.mxu0 %v279
    %297 = vmatpush.bf16.msra.mxu0 %v278
    %298 = vmatpush.bf16.msra.mxu0 %v277
    %299 = vmatpush.bf16.msra.mxu0 %v276
    %300 = vmatmul.bf16.gmra.mxu0 %v225
    %v301 = vpop.f32.mrf.mxu0
    %v302 = vadd.f32 %v243, %v301
    %v303 = vpop.f32.mrf.mxu0
    %v304 = vadd.f32 %v243, %v303
    %305 = vmatmul.bf16.gmra.mxu0 %v226
    %v306 = vpop.f32.mrf.mxu0
    %v307 = vadd.f32 %v243, %v306
    %v308 = vpop.f32.mrf.mxu0
    %v309 = vadd.f32 %v243, %v308
    %310 = vdwg.mxu0
    %v311 = vld [vmem:[#allocation8] sm:$0xf]
    %v312 = vld [vmem:[#allocation8 + $0x4] sm:$0xf]
    %v313 = vld [vmem:[#allocation8 + $0x8] sm:$0xf]
    %v314 = vld [vmem:[#allocation8 + $0xc] sm:$0xf]
    %v315 = vld [vmem:[#allocation8 + $0x10] sm:$0xf]
    %v316 = vld [vmem:[#allocation8 + $0x14] sm:$0xf]
    %v317 = vld [vmem:[#allocation8 + $0x18] sm:$0xf]
    %v318 = vld [vmem:[#allocation8 + $0x1c] sm:$0xf]
    %v319 = vld [vmem:[#allocation8 + $0x20] sm:$0xf]
    %v320 = vld [vmem:[#allocation8 + $0x24] sm:$0xf]
    %v321 = vld [vmem:[#allocation8 + $0x28] sm:$0xf]
    %v322 = vld [vmem:[#allocation8 + $0x2c] sm:$0xf]
    %v323 = vld [vmem:[#allocation8 + $0x30] sm:$0xf]
    %v324 = vld [vmem:[#allocation8 + $0x34] sm:$0xf]
    %v325 = vld [vmem:[#allocation8 + $0x38] sm:$0xf]
    %v326 = vld [vmem:[#allocation8 + $0x3c] sm:$0xf]
    %v327 = vperm.slane %v223, 1
    %v344 = vunpack.c.l.b16 %v311
    %v345 = vunpack.c.l.b16 %v312
    %v346 = vunpack.c.l.b16 %v313
    %v347 = vunpack.c.l.b16 %v314
    %v348 = vunpack.c.l.b16 %v315
    %v349 = vunpack.c.l.b16 %v316
    %v350 = vunpack.c.l.b16 %v317
    %v351 = vunpack.c.l.b16 %v318
    %v352 = vunpack.c.l.b16 %v319
    %v353 = vunpack.c.l.b16 %v320
    %v354 = vunpack.c.l.b16 %v321
    %v355 = vunpack.c.l.b16 %v322
    %v356 = vunpack.c.l.b16 %v323
    %v357 = vunpack.c.l.b16 %v324
    %v358 = vunpack.c.l.b16 %v325
    %v359 = vunpack.c.l.b16 %v326
    %v360 = vpack.c.b16 %v345, %v344
    %v361 = vpack.c.b16 %v347, %v346
    %v362 = vpack.c.b16 %v349, %v348
    %v363 = vpack.c.b16 %v351, %v350
    %v364 = vpack.c.b16 %v353, %v352
    %v365 = vpack.c.b16 %v355, %v354
    %v366 = vpack.c.b16 %v357, %v356
    %v367 = vpack.c.b16 %v359, %v358
    %376 = vmatpush.bf16.msra.mxu0 %v367
    %377 = vmatpush.bf16.msra.mxu0 %v366
    %378 = vmatpush.bf16.msra.mxu0 %v365
    %379 = vmatpush.bf16.msra.mxu0 %v364
    %380 = vmatpush.bf16.msra.mxu0 %v363
    %381 = vmatpush.bf16.msra.mxu0 %v362
    %382 = vmatpush.bf16.msra.mxu0 %v361
    %383 = vmatpush.bf16.msra.mxu0 %v360
    %384 = vmatmul.bf16.gmra.mxu0 %v225
    %v385 = vpop.f32.mrf.mxu0
    %v386 = vadd.f32 %v327, %v385
    %v387 = vpop.f32.mrf.mxu0
    %v388 = vadd.f32 %v327, %v387
    %389 = vmatmul.bf16.gmra.mxu0 %v226
    %v390 = vpop.f32.mrf.mxu0
    %v391 = vadd.f32 %v327, %v390
    %v392 = vpop.f32.mrf.mxu0
    %v393 = vadd.f32 %v327, %v392
    %394 = vdwg.mxu0
    %v395 = vxor.u32 %v386, 2147483648
    %v396 = vxor.u32 %v388, 2147483648
    %v397 = vxor.u32 %v391, 2147483648
    %v398 = vxor.u32 %v393, 2147483648
    %v399 = vmul.f32 %v395, 1.442695
    %v400 = vpow.pop %v399
    %v401 = vmul.f32 %v396, 1.442695
    %v402 = vpow.pop %v401
    %v403 = vmul.f32 %v397, 1.442695
    %v404 = vpow.pop %v403
    %v405 = vmul.f32 %v398, 1.442695
    %v406 = vpow.pop %v405
    %v407 = vadd.f32 %v400, 1.0
    %v408 = vadd.f32 %v402, 1.0
    %v409 = vadd.f32 %v404, 1.0
    %v410 = vadd.f32 %v406, 1.0
    %v411 = vrcp.pop %v407
    %v412 = vmul.f32 %v407, %v411
    %v413 = vsub.f32 1.0, %v412
    %v414 = vmul.f32 %v411, %v413
    %v415 = vadd.f32 %v411, %v414
    %vm416 = vweird.f32 %v407
    %vm417 = vweird.f32 %v411
    %vm418 = vmor %vm416, %vm417
    %v419 = vsel %vm418, %v411, %v415
    %v420 = vand.u32 2147483647, %v407
    %vm421 = vcmp.eq.f32.partialorder %v420, 8.507059e+37
    %v422 = vand.u32 %v407, 2147483648
    %v423 = vor.u32 1.1754944e-38, %v422
    %v424 = vsel %vm421, %v423, %v419
    %v425 = vmul.f32 1.0, %v424
    %v426 = vrcp.pop %v408
    %v427 = vmul.f32 %v408, %v426
    %v428 = vsub.f32 1.0, %v427
    %v429 = vmul.f32 %v426, %v428
    %v430 = vadd.f32 %v426, %v429
    %vm431 = vweird.f32 %v408
    %vm432 = vweird.f32 %v426
    %vm433 = vmor %vm431, %vm432
    %v434 = vsel %vm433, %v426, %v430
    %v435 = vand.u32 2147483647, %v408
    %vm436 = vcmp.eq.f32.partialorder %v435, 8.507059e+37
    %v437 = vand.u32 %v408, 2147483648
    %v438 = vor.u32 1.1754944e-38, %v437
    %v439 = vsel %vm436, %v438, %v434
    %v440 = vmul.f32 1.0, %v439
    %v441 = vrcp.pop %v409
    %v442 = vmul.f32 %v409, %v441
    %v443 = vsub.f32 1.0, %v442
    %v444 = vmul.f32 %v441, %v443
    %v445 = vadd.f32 %v441, %v444
    %vm446 = vweird.f32 %v409
    %vm447 = vweird.f32 %v441
    %vm448 = vmor %vm446, %vm447
    %v449 = vsel %vm448, %v441, %v445
    %v450 = vand.u32 2147483647, %v409
    %vm451 = vcmp.eq.f32.partialorder %v450, 8.507059e+37
    %v452 = vand.u32 %v409, 2147483648
    %v453 = vor.u32 1.1754944e-38, %v452
    %v454 = vsel %vm451, %v453, %v449
    %v455 = vmul.f32 1.0, %v454
    %v456 = vrcp.pop %v410
    %v457 = vmul.f32 %v410, %v456
    %v458 = vsub.f32 1.0, %v457
    %v459 = vmul.f32 %v456, %v458
    %v460 = vadd.f32 %v456, %v459
    %vm461 = vweird.f32 %v410
    %vm462 = vweird.f32 %v456
    %vm463 = vmor %vm461, %vm462
    %v464 = vsel %vm463, %v456, %v460
    %v465 = vand.u32 2147483647, %v410
    %vm466 = vcmp.eq.f32.partialorder %v465, 8.507059e+37
    %v467 = vand.u32 %v410, 2147483648
    %v468 = vor.u32 1.1754944e-38, %v467
    %v469 = vsel %vm466, %v468, %v464
    %v470 = vmul.f32 1.0, %v469
    %v471 = vmul.f32 %v302, %v425
    %v472 = vmul.f32 %v304, %v440
    %v473 = vmul.f32 %v307, %v455
    %v474 = vmul.f32 %v309, %v470
    %v475 = vperm.slane %v223, 5
    %v476 = vmul.f32 %v475, 0.0
    %v477 = vmul.f32 %v471, %v475
    %v478 = vmul.f32 %v472, %v475
    %v479 = vperm.slane %v223, 6
    %v480 = vmul.f32 %v479, 0.0
    %v481 = vmul.f32 %v471, %v479
    %v482 = vmul.f32 %v472, %v479
    %vm486 = vcmask 1046528
    %v487 = vrot.slane %v480, 1
    %v488 = vrot.slane %v481, 1
    %v489 = vsel %vm486, %v487, %v488
    %v490 = vrot.slane %v482, 1
    %v491 = vsel %vm486, %v488, %v490
    %v495 = vadd.f32 %v476, %v489
    %v496 = vadd.f32 %v477, %v491
    %v497 = vadd.f32 %v478, %v490
    %v498 = vperm.slane %v223, 7
    %v499 = vmul.f32 %v498, 0.0
    %v500 = vmul.f32 %v471, %v498
    %v501 = vmul.f32 %v472, %v498
    %vm505 = vcmask 1045504
    %v506 = vrot.slane %v499, 2
    %v507 = vrot.slane %v500, 2
    %v508 = vsel %vm505, %v506, %v507
    %v509 = vrot.slane %v501, 2
    %v510 = vsel %vm505, %v507, %v509
    %v514 = vadd.f32 %v495, %v508
    %v515 = vadd.f32 %v496, %v510
    %v516 = vadd.f32 %v497, %v509
    %v517 = vperm.slane %v224, 0
    %v518 = vmul.f32 %v471, %v517
    %v519 = vmul.f32 %v472, %v517
    %vm522 = vcmask 1044480
    %v523 = vrot.slane %v518, 3
    %v524 = vrot.slane %v519, 3
    %v525 = vsel %vm522, %v523, %v524
    %v529 = vadd.f32 %v514, %v523
    %v530 = vadd.f32 %v515, %v525
    %v531 = vadd.f32 %v516, %v524
    %v532 = vperm.slane %v224, 1
    %v533 = vmul.f32 %v471, %v532
    %v534 = vmul.f32 %v472, %v532
    %v535 = vmul.f32 %v532, 0.0
    %vm539 = vcmask 1043456
    %v540 = vrot.slane %v533, 4
    %v541 = vrot.slane %v534, 4
    %v542 = vsel %vm539, %v540, %v541
    %v543 = vrot.slane %v535, 4
    %v544 = vsel %vm539, %v541, %v543
    %v548 = vadd.f32 %v529, %v540
    %v549 = vadd.f32 %v530, %v542
    %v550 = vadd.f32 %v531, %v544
    %v551 = vperm.slane %v224, 2
    %v552 = vmul.f32 %v471, %v551
    %v553 = vmul.f32 %v472, %v551
    %v554 = vmul.f32 %v551, 0.0
    %vm558 = vcmask 1042432
    %v559 = vrot.slane %v552, 5
    %v560 = vrot.slane %v553, 5
    %v561 = vsel %vm558, %v559, %v560
    %v562 = vrot.slane %v554, 5
    %v563 = vsel %vm558, %v560, %v562
    %v567 = vadd.f32 %v548, %v559
    %v568 = vadd.f32 %v549, %v561
    %v569 = vadd.f32 %v550, %v563
    %v570 = vperm.slane %v224, 3
    %v571 = vmul.f32 %v471, %v570
    %v572 = vmul.f32 %v472, %v570
    %v573 = vmul.f32 %v570, 0.0
    %vm577 = vcmask 1041408
    %v578 = vrot.slane %v571, 6
    %v579 = vrot.slane %v572, 6
    %v580 = vsel %vm577, %v578, %v579
    %v581 = vrot.slane %v573, 6
    %v582 = vsel %vm577, %v579, %v581
    %v586 = vadd.f32 %v567, %v578
    %v587 = vadd.f32 %v568, %v580
    %v588 = vadd.f32 %v569, %v582
    %v589 = vperm.slane %v223, 2
    %v590 = vadd.f32 %v586, %v589
    %v591 = vadd.f32 %v587, %v589
    %v592 = vadd.f32 %v588, %v589
    %v596 = vrot.slane %v590, 5
    %v597 = vrot.slane %v591, 5
    %v598 = vsel %vm558, %v596, %v597
    %v599 = vrot.slane %v592, 5
    %v600 = vsel %vm558, %v597, %v599
    %v603 = vadd.f32 %v598, %v600
    %604 = vadd.xlane.f32.xlu0 %v603
    %v605 = vpop.xlane.xlu0 %604
    %v606 = vrot.slane %v605, 4
    %v607 = vadd.f32 %v605, %v606
    %v608 = vrot.slane %v607, 2
    %v609 = vadd.f32 %v607, %v608
    %v610 = vrot.slane %v609, 1
    %v611 = vadd.f32 %v609, %v610
    %s612 = vtos %v611
    %v613 = vmul.f32 %v590, %v590
    %v614 = vmul.f32 %v591, %v591
    %v615 = vmul.f32 %v592, %v592
    %v619 = vrot.slane %v613, 5
    %v620 = vrot.slane %v614, 5
    %v621 = vsel %vm558, %v619, %v620
    %v622 = vrot.slane %v615, 5
    %v623 = vsel %vm558, %v620, %v622
    %v626 = vadd.f32 %v621, %v623
    %627 = vadd.xlane.f32.xlu0 %v626
    %v628 = vpop.xlane.xlu0 %627
    %v629 = vrot.slane %v628, 4
    %v630 = vadd.f32 %v628, %v629
    %v631 = vrot.slane %v630, 2
    %v632 = vadd.f32 %v630, %v631
    %v633 = vrot.slane %v632, 1
    %v634 = vadd.f32 %v632, %v633
    %s635 = vtos %v634
    %s636 = smul.f32 %s612, 0.0009765625
    %s637 = smul.f32 %s635, 0.0009765625
    %s638 = smul.f32 %s636, %s636
    %s639 = ssub.f32 %s637, %s638
    %s640 = smax.f32 %s639, 0.0
    %s641 = sadd.f32 %s640, 1e-05
    %v642 = vstv %s641
    %v643 = vrsqrt.pop %v642
    %v644 = vmul.f32 %v643, %v642
    %v645 = vmul.f32 %v644, %v643
    %v646 = vmul.f32 0.5, %v645
    %v647 = vsub.f32 1.5, %v646
    %v648 = vmul.f32 %v643, %v647
    %vm649 = vweird.f32 %v642
    %vm650 = vweird.f32 %v643
    %vm651 = vmor %vm649, %vm650
    %v652 = vsel %vm651, %v643, %v648
    %s653 = vtos %v652
    %v654 = vstv %s653
    %v655 = vmul.f32 %v223, %v654
    %v656 = vstv %s636
    %v657 = vmul.f32 %v656, %v655
    %v659 = vrot.slane %v657, 7
    %v661 = vsub.f32 %v223, %v659
    %v662 = vperm.slane %v655, 3
    %v663 = vmul.f32 %v590, %v662
    %v664 = vmul.f32 %v591, %v662
    %v665 = vmul.f32 %v592, %v662
    %v666 = vperm.slane %v661, 4
    %v667 = vadd.f32 %v663, %v666
    %v668 = vadd.f32 %v664, %v666
    %v669 = vadd.f32 %v665, %v666
    %vm670 = vcmp.ge.f32.partialorder %v667, 0.0
    %vm671 = vcmp.ge.f32.partialorder %v668, 0.0
    %vm672 = vcmp.ge.f32.partialorder %v669, 0.0
    %v673 = vmul.f32 %v667, 0.3
    %v674 = vmul.f32 %v668, 0.3
    %v675 = vmul.f32 %v669, 0.3
    %v676 = vsel %vm670, %v667, %v673
    %v677 = vsel %vm671, %v668, %v674
    %v678 = vsel %vm672, %v669, %v675
    %v679 = vmul.f32 %v473, %v475
    %v680 = vmul.f32 %v474, %v475
    %v681 = vmul.f32 %v473, %v479
    %v682 = vmul.f32 %v474, %v479
    %v685 = vrot.slane %v681, 1
    %v686 = vsel %vm486, %v487, %v685
    %v687 = vrot.slane %v682, 1
    %v688 = vsel %vm486, %v685, %v687
    %v692 = vadd.f32 %v476, %v686
    %v693 = vadd.f32 %v679, %v688
    %v694 = vadd.f32 %v680, %v687
    %v695 = vmul.f32 %v473, %v498
    %v696 = vmul.f32 %v474, %v498
    %v699 = vrot.slane %v695, 2
    %v700 = vsel %vm505, %v506, %v699
    %v701 = vrot.slane %v696, 2
    %v702 = vsel %vm505, %v699, %v701
    %v706 = vadd.f32 %v692, %v700
    %v707 = vadd.f32 %v693, %v702
    %v708 = vadd.f32 %v694, %v701
    %v709 = vmul.f32 %v473, %v517
    %v710 = vmul.f32 %v474, %v517
    %v713 = vrot.slane %v709, 3
    %v714 = vrot.slane %v710, 3
    %v715 = vsel %vm522, %v713, %v714
    %v719 = vadd.f32 %v706, %v713
    %v720 = vadd.f32 %v707, %v715
    %v721 = vadd.f32 %v708, %v714
    %v722 = vmul.f32 %v473, %v532
    %v723 = vmul.f32 %v474, %v532
    %v726 = vrot.slane %v722, 4
    %v727 = vrot.slane %v723, 4
    %v728 = vsel %vm539, %v726, %v727
    %v729 = vsel %vm539, %v727, %v543
    %v733 = vadd.f32 %v719, %v726
    %v734 = vadd.f32 %v720, %v728
    %v735 = vadd.f32 %v721, %v729
    %v736 = vmul.f32 %v473, %v551
    %v737 = vmul.f32 %v474, %v551
    %v740 = vrot.slane %v736, 5
    %v741 = vrot.slane %v737, 5
    %v742 = vsel %vm558, %v740, %v741
    %v743 = vsel %vm558, %v741, %v562
    %v747 = vadd.f32 %v733, %v740
    %v748 = vadd.f32 %v734, %v742
    %v749 = vadd.f32 %v735, %v743
    %v750 = vmul.f32 %v473, %v570
    %v751 = vmul.f32 %v474, %v570
    %v754 = vrot.slane %v750, 6
    %v755 = vrot.slane %v751, 6
    %v756 = vsel %vm577, %v754, %v755
    %v757 = vsel %vm577, %v755, %v581
    %v761 = vadd.f32 %v747, %v754
    %v762 = vadd.f32 %v748, %v756
    %v763 = vadd.f32 %v749, %v757
    %v764 = vadd.f32 %v761, %v589
    %v765 = vadd.f32 %v762, %v589
    %v766 = vadd.f32 %v763, %v589
    %v770 = vrot.slane %v764, 5
    %v771 = vrot.slane %v765, 5
    %v772 = vsel %vm558, %v770, %v771
    %v773 = vrot.slane %v766, 5
    %v774 = vsel %vm558, %v771, %v773
    %v777 = vadd.f32 %v772, %v774
    %778 = vadd.xlane.f32.xlu0 %v777
    %v779 = vpop.xlane.xlu0 %778
    %v780 = vrot.slane %v779, 4
    %v781 = vadd.f32 %v779, %v780
    %v782 = vrot.slane %v781, 2
    %v783 = vadd.f32 %v781, %v782
    %v784 = vrot.slane %v783, 1
    %v785 = vadd.f32 %v783, %v784
    %s786 = vtos %v785
    %v787 = vmul.f32 %v764, %v764
    %v788 = vmul.f32 %v765, %v765
    %v789 = vmul.f32 %v766, %v766
    %v793 = vrot.slane %v787, 5
    %v794 = vrot.slane %v788, 5
    %v795 = vsel %vm558, %v793, %v794
    %v796 = vrot.slane %v789, 5
    %v797 = vsel %vm558, %v794, %v796
    %v800 = vadd.f32 %v795, %v797
    %801 = vadd.xlane.f32.xlu0 %v800
    %v802 = vpop.xlane.xlu0 %801
    %v803 = vrot.slane %v802, 4
    %v804 = vadd.f32 %v802, %v803
    %v805 = vrot.slane %v804, 2
    %v806 = vadd.f32 %v804, %v805
    %v807 = vrot.slane %v806, 1
    %v808 = vadd.f32 %v806, %v807
    %s809 = vtos %v808
    %s810 = smul.f32 %s786, 0.0009765625
    %s811 = smul.f32 %s809, 0.0009765625
    %s812 = smul.f32 %s810, %s810
    %s813 = ssub.f32 %s811, %s812
    %s814 = smax.f32 %s813, 0.0
    %s815 = sadd.f32 %s814, 1e-05
    %v816 = vstv %s815
    %v817 = vrsqrt.pop %v816
    %v818 = vmul.f32 %v817, %v816
    %v819 = vmul.f32 %v818, %v817
    %v820 = vmul.f32 0.5, %v819
    %v821 = vsub.f32 1.5, %v820
    %v822 = vmul.f32 %v817, %v821
    %vm823 = vweird.f32 %v816
    %vm824 = vweird.f32 %v817
    %vm825 = vmor %vm823, %vm824
    %v826 = vsel %vm825, %v817, %v822
    %s827 = vtos %v826
    %v828 = vstv %s827
    %v829 = vmul.f32 %v223, %v828
    %v830 = vstv %s810
    %v831 = vmul.f32 %v830, %v829
    %v833 = vrot.slane %v831, 7
    %v835 = vsub.f32 %v223, %v833
    %v836 = vperm.slane %v829, 3
    %v837 = vmul.f32 %v764, %v836
    %v838 = vmul.f32 %v765, %v836
    %v839 = vmul.f32 %v766, %v836
    %v840 = vperm.slane %v835, 4
    %v841 = vadd.f32 %v837, %v840
    %v842 = vadd.f32 %v838, %v840
    %v843 = vadd.f32 %v839, %v840
    %vm844 = vcmp.ge.f32.partialorder %v841, 0.0
    %vm845 = vcmp.ge.f32.partialorder %v842, 0.0
    %vm846 = vcmp.ge.f32.partialorder %v843, 0.0
    %v847 = vmul.f32 %v841, 0.3
    %v848 = vmul.f32 %v842, 0.3
    %v849 = vmul.f32 %v843, 0.3
    %v850 = vsel %vm844, %v841, %v847
    %v851 = vsel %vm845, %v842, %v848
    %v852 = vsel %vm846, %v843, %v849
    %v856 = vrot.slane %v676, 5
    %v857 = vrot.slane %v677, 5
    %v858 = vsel %vm558, %v856, %v857
    %v859 = vrot.slane %v678, 5
    %v860 = vsel %vm558, %v857, %v859
    %v866 = vrot.slane %v850, 5
    %v867 = vrot.slane %v851, 5
    %v868 = vsel %vm558, %v866, %v867
    %v869 = vrot.slane %v852, 5
    %v870 = vsel %vm558, %v867, %v869
    %v873 = vpack.c.bf16 %v860, %v858
    %v874 = vpack.c.bf16 %v870, %v868
    %v875 = vld [vmem:[#allocation11] sm:$0xf]
    %v876 = vld [vmem:[#allocation11 + $0x4] sm:$0xf]
    %v877 = vld [vmem:[#allocation11 + $0x8] sm:$0xf]
    %v878 = vld [vmem:[#allocation11 + $0xc] sm:$0xf]
    %v879 = vld [vmem:[#allocation11 + $0x10] sm:$0xf]
    %v880 = vld [vmem:[#allocation11 + $0x14] sm:$0xf]
    %v881 = vld [vmem:[#allocation11 + $0x18] sm:$0xf]
    %v882 = vld [vmem:[#allocation11 + $0x1c] sm:$0xf]
    %v883 = vld [vmem:[#allocation11 + $0x20] sm:$0xf]
    %v884 = vld [vmem:[#allocation11 + $0x24] sm:$0xf]
    %v885 = vld [vmem:[#allocation11 + $0x28] sm:$0xf]
    %v886 = vld [vmem:[#allocation11 + $0x2c] sm:$0xf]
    %v887 = vld [vmem:[#allocation11 + $0x30] sm:$0xf]
    %v888 = vld [vmem:[#allocation11 + $0x34] sm:$0xf]
    %v889 = vld [vmem:[#allocation11 + $0x38] sm:$0xf]
    %v890 = vld [vmem:[#allocation11 + $0x3c] sm:$0xf]
    %v891 = vperm.slane %v204, 2
    %v908 = vunpack.c.l.b16 %v875
    %v909 = vunpack.c.l.b16 %v876
    %v910 = vunpack.c.l.b16 %v877
    %v911 = vunpack.c.l.b16 %v878
    %v912 = vunpack.c.l.b16 %v879
    %v913 = vunpack.c.l.b16 %v880
    %v914 = vunpack.c.l.b16 %v881
    %v915 = vunpack.c.l.b16 %v882
    %v916 = vunpack.c.l.b16 %v883
    %v917 = vunpack.c.l.b16 %v884
    %v918 = vunpack.c.l.b16 %v885
    %v919 = vunpack.c.l.b16 %v886
    %v920 = vunpack.c.l.b16 %v887
    %v921 = vunpack.c.l.b16 %v888
    %v922 = vunpack.c.l.b16 %v889
    %v923 = vunpack.c.l.b16 %v890
    %v924 = vpack.c.b16 %v909, %v908
    %v925 = vpack.c.b16 %v911, %v910
    %v926 = vpack.c.b16 %v913, %v912
    %v927 = vpack.c.b16 %v915, %v914
    %v928 = vpack.c.b16 %v917, %v916
    %v929 = vpack.c.b16 %v919, %v918
    %v930 = vpack.c.b16 %v921, %v920
    %v931 = vpack.c.b16 %v923, %v922
    %940 = vmatpush.bf16.msra.mxu0 %v931
    %941 = vmatpush.bf16.msra.mxu0 %v930
    %942 = vmatpush.bf16.msra.mxu0 %v929
    %943 = vmatpush.bf16.msra.mxu0 %v928
    %944 = vmatpush.bf16.msra.mxu0 %v927
    %945 = vmatpush.bf16.msra.mxu0 %v926
    %946 = vmatpush.bf16.msra.mxu0 %v925
    %947 = vmatpush.bf16.msra.mxu0 %v924
    %948 = vmatmul.bf16.gmra.mxu0 %v873
    %v949 = vpop.f32.mrf.mxu0
    %v950 = vadd.f32 %v891, %v949
    %v951 = vpop.f32.mrf.mxu0
    %v952 = vadd.f32 %v891, %v951
    %953 = vmatmul.bf16.gmra.mxu0 %v874
    %v954 = vpop.f32.mrf.mxu0
    %v955 = vadd.f32 %v891, %v954
    %v956 = vpop.f32.mrf.mxu0
    %v957 = vadd.f32 %v891, %v956
    %958 = vdwg.mxu0
    %959 = vst [vmem:[#allocation13] sm:$0xff] %v950
    %960 = vst [vmem:[#allocation13 + $0x8] sm:$0xff] %v952
    %961 = vst [vmem:[#allocation13 + $0x10] sm:$0xff] %v955
    %962 = vst [vmem:[#allocation13 + $0x18] sm:$0xff] %v957
    // Predicated region
    $region50: #{tpu_custom_call.1} parent=1 // pred_check
      _
    $region51: #{tpu_custom_call.1} parent=1 // pred_check_branch
      %964 = sbr.rel (0) target = $region53
    $region52: #{tpu_custom_call.1} parent=1 // pred_region
      %966 = vsyncadd [#allocation4], 0
      %s967 = sshll.u32 [#allocation13], 4
      %s968 = int_to_ptr.vmem [resolvable:$true] %s967
      %s969 = sshll.u32 %s6, 4
      %s970 = int_to_ptr.hbm [resolvable:$true] %s969
      %975 = dma.vmem_to_hbm [thread:$0]  %s968, 512, %s970, [#allocation4], 128, 128, 8
    $region53: #{tpu_custom_call.1} parent=1 // pred_fallthru
      _
    // Predicated region
    $region54: #{tpu_custom_call.1} parent=1 // pred_check
      _
    $region55: #{tpu_custom_call.1} parent=1 // pred_check_branch
      %977 = sbr.rel (0) target = $region57
    $region56: #{tpu_custom_call.1} parent=1 // pred_region
      %979 = dma.done [#allocation4], 512
    $region57: #{tpu_custom_call.1} parent=1 // pred_fallthru
      _
    %980 = vsyncpa [#allocation3], 1
    %981 = vsyncpa [#allocation6], 1
    %982 = vsyncpa [#allocation9], 1
    %983 = vsyncpa [#allocation12], 1
    %984 = vsyncpa [#allocation4], 1

// kernel: tpu_custom_call.1
$region0: #{tpu_custom_call.1}
  #allocation0 [shape = 'u32[]', space=smem, size = 0x4, offset = 0x4, fixed_abs, tag = 'smem constant byte address 0x4 - core index']
  #allocation1 [shape = 'u32[72,128]{1,0:T(1,128)}', space=vmem, size = 0x9000, scoped, tag = 'internal scratch']
  %s0 = inlined_call_operand.hbm [shape: f32[32,128], index: 0, kind: input, shape index: {}]
  %s1 = inlined_call_operand.hbm [shape: f32[3,128], index: 1, kind: input, shape index: {}]
  %s2 = inlined_call_operand.hbm [shape: bf16[128,128], index: 2, kind: input, shape index: {}]
  %s3 = inlined_call_operand.hbm [shape: bf16[128,128], index: 3, kind: input, shape index: {}]
  %s4 = inlined_call_operand.hbm [shape: f32[12,128], index: 4, kind: input, shape index: {}]
  %s5 = inlined_call_operand.hbm [shape: bf16[128,128], index: 5, kind: input, shape index: {}]
  %s6 = inlined_call_operand.hbm [shape: f32[32,128], index: 6, kind: output, shape index: {}]
  %s7 = sld [smem:[#allocation0]]
  $region58: #{tpu_custom_call.1} parent=0
    _
  %s9 = ssub.s32 1, %s7
  %s10 = scalar_select 0, %s9, %s7
  $region1: #{tpu_custom_call.1} parent=0
    #allocation2 [shape = 'u8[16384]{0}', space=vmem, size = 0x4000, scoped, tag = 'input window, operand 0, single buffered']
    #allocation3 [shape = 's32[1]{0}', space=sflag, size = 0x4, scoped, tag = 'scoped memory for tpu_custom_call.1']
    #allocation4 [shape = 's32[1]{0}', space=sflag, size = 0x4, scoped, tag = 'scoped memory for tpu_custom_call.1']
    #allocation5 [shape = 'u8[2048]{0}', space=vmem, size = 0x800, scoped, tag = 'input window, operand 1, single buffered']
    #allocation6 [shape = 's32[1]{0}', space=sflag, size = 0x4, scoped, tag = 'scoped memory for tpu_custom_call.1']
    #allocation7 [shape = 'u8[32768]{0}', space=vmem, size = 0x8000, scoped, tag = 'input window, operand 2, single buffered']
    #allocation8 [shape = 'u8[32768]{0}', space=vmem, size = 0x8000, scoped, tag = 'input window, operand 3, single buffered']
    #allocation9 [shape = 's32[1]{0}', space=sflag, size = 0x4, scoped, tag = 'scoped memory for tpu_custom_call.1']
    #allocation10 [shape = 'u8[8192]{0}', space=vmem, size = 0x2000, scoped, tag = 'input window, operand 4, single buffered']
    #allocation11 [shape = 'u8[32768]{0}', space=vmem, size = 0x8000, scoped, tag = 'input window, operand 5, single buffered']
    #allocation12 [shape = 's32[1]{0}', space=sflag, size = 0x4, scoped, tag = 'scoped memory for tpu_custom_call.1']
    #allocation13 [shape = 'u8[16384]{0}', space=vmem, size = 0x4000, scoped, tag = 'output window, operand 0, single buffered']
    %11 = vsyncpa [#allocation3], 0
    %12 = vsyncpa [#allocation6], 0
    %13 = vsyncpa [#allocation9], 0
    %14 = vsyncpa [#allocation12], 0
    %15 = vsyncpa [#allocation4], 0
    // Predicated region
    $region2: #{tpu_custom_call.1} parent=1 // pred_check
      _
    $region3: #{tpu_custom_call.1} parent=1 // pred_check_branch
      %17 = sbr.rel (0) target = $region5
    $region4: #{tpu_custom_call.1} parent=1 // pred_region
      %19 = vsyncadd [#allocation3], 0
      %s20 = sshll.u32 %s0, 4
      %s21 = int_to_ptr.hbm [resolvable:$true] %s20
      %s22 = sshll.u32 [#allocation2], 4
      %s23 = int_to_ptr.vmem [resolvable:$true] %s22
      %28 = dma.hbm_to_vmem [thread:$0]  %s21, 512, %s23, [#allocation3], 128, 128, 8
    $region5: #{tpu_custom_call.1} parent=1 // pred_fallthru
      _
    // Predicated region
    $region6: #{tpu_custom_call.1} parent=1 // pred_check
      _
    $region7: #{tpu_custom_call.1} parent=1 // pred_check_branch
      %30 = sbr.rel (0) target = $region9
    $region8: #{tpu_custom_call.1} parent=1 // pred_region
      %32 = vsyncadd [#allocation6], 0
      %s34 = sshll.u32 %s1, 4
      %s35 = int_to_ptr.hbm [resolvable:$true] %s34
      %s36 = sshll.u32 [#allocation5], 4
      %s37 = int_to_ptr.vmem [resolvable:$true] %s36
      %39 = dma.hbm_to_vmem [thread:$0]  %s35, 64, %s37, [#allocation6]
    $region9: #{tpu_custom_call.1} parent=1 // pred_fallthru
      _
    // Predicated region
    $region10: #{tpu_custom_call.1} parent=1 // pred_check
      _
    $region11: #{tpu_custom_call.1} parent=1 // pred_check_branch
      %41 = sbr.rel (0) target = $region13
    $region12: #{tpu_custom_call.1} parent=1 // pred_region
      %43 = vsyncadd [#allocation6], 0
      %s44 = sshll.u32 %s2, 4
      %s45 = int_to_ptr.hbm [resolvable:$true] %s44
      %s46 = sshll.u32 [#allocation7], 4
      %s47 = int_to_ptr.vmem [resolvable:$true] %s46
      %52 = dma.hbm_to_vmem [thread:$0]  %s45, 1024, %s47, [#allocation6], 64, 64, 4
    $region13: #{tpu_custom_call.1} parent=1 // pred_fallthru
      _
    // Predicated region
    $region14: #{tpu_custom_call.1} parent=1 // pred_check
      _
    $region15: #{tpu_custom_call.1} parent=1 // pred_check_branch
      %54 = sbr.rel (0) target = $region17
    $region16: #{tpu_custom_call.1} parent=1 // pred_region
      %56 = vsyncadd [#allocation9], 0
      %s57 = sshll.u32 %s3, 4
      %s58 = int_to_ptr.hbm [resolvable:$true] %s57
      %s59 = sshll.u32 [#allocation8], 4
      %s60 = int_to_ptr.vmem [resolvable:$true] %s59
      %65 = dma.hbm_to_vmem [thread:$0]  %s58, 1024, %s60, [#allocation9], 64, 64, 4
    $region17: #{tpu_custom_call.1} parent=1 // pred_fallthru
      _
    // Predicated region
    $region18: #{tpu_custom_call.1} parent=1 // pred_check
      _
    $region19: #{tpu_custom_call.1} parent=1 // pred_check_branch
      %67 = sbr.rel (0) target = $region21
    $region20: #{tpu_custom_call.1} parent=1 // pred_region
      %69 = vsyncadd [#allocation9], 0
      %s70 = sshll.u32 %s4, 4
      %s71 = int_to_ptr.hbm [resolvable:$true] %s70
      %s72 = sshll.u32 [#allocation10], 4
      %s73 = int_to_ptr.vmem [resolvable:$true] %s72
      %78 = dma.hbm_to_vmem [thread:$0]  %s71, 256, %s73, [#allocation9], 128, 128, 8
    $region21: #{tpu_custom_call.1} parent=1 // pred_fallthru
      _
    // Predicated region
    $region22: #{tpu_custom_call.1} parent=1 // pred_check
      _
    $region23: #{tpu_custom_call.1} parent=1 // pred_check_branch
      %80 = sbr.rel (0) target = $region25
    $region24: #{tpu_custom_call.1} parent=1 // pred_region
      %82 = vsyncadd [#allocation12], 0
      %s83 = sshll.u32 %s5, 4
      %s84 = int_to_ptr.hbm [resolvable:$true] %s83
      %s85 = sshll.u32 [#allocation11], 4
      %s86 = int_to_ptr.vmem [resolvable:$true] %s85
      %91 = dma.hbm_to_vmem [thread:$0]  %s84, 1024, %s86, [#allocation12], 64, 64, 4
    $region25: #{tpu_custom_call.1} parent=1 // pred_fallthru
      _
    // Predicated region
    $region26: #{tpu_custom_call.1} parent=1 // pred_check
      _
    $region27: #{tpu_custom_call.1} parent=1 // pred_check_branch
      %93 = sbr.rel (0) target = $region29
    $region28: #{tpu_custom_call.1} parent=1 // pred_region
      %95 = dma.done [#allocation3], 512
    $region29: #{tpu_custom_call.1} parent=1 // pred_fallthru
      _
    // Predicated region
    $region30: #{tpu_custom_call.1} parent=1 // pred_check
      _
    $region31: #{tpu_custom_call.1} parent=1 // pred_check_branch
      %97 = sbr.rel (0) target = $region33
    $region32: #{tpu_custom_call.1} parent=1 // pred_region
      %99 = dma.done [#allocation6], 64
    $region33: #{tpu_custom_call.1} parent=1 // pred_fallthru
      _
    // Predicated region
    $region34: #{tpu_custom_call.1} parent=1 // pred_check
      _
    $region35: #{tpu_custom_call.1} parent=1 // pred_check_branch
      %101 = sbr.rel (0) target = $region37
    $region36: #{tpu_custom_call.1} parent=1 // pred_region
      %103 = dma.done [#allocation6], 1024
    $region37: #{tpu_custom_call.1} parent=1 // pred_fallthru
      _
    // Predicated region
    $region38: #{tpu_custom_call.1} parent=1 // pred_check
      _
    $region39: #{tpu_custom_call.1} parent=1 // pred_check_branch
      %105 = sbr.rel (0) target = $region41
    $region40: #{tpu_custom_call.1} parent=1 // pred_region
      %107 = dma.done [#allocation9], 1024
    $region41: #{tpu_custom_call.1} parent=1 // pred_fallthru
      _
    // Predicated region
    $region42: #{tpu_custom_call.1} parent=1 // pred_check
      _
    $region43: #{tpu_custom_call.1} parent=1 // pred_check_branch
      %109 = sbr.rel (0) target = $region45
    $region44: #{tpu_custom_call.1} parent=1 // pred_region
      %111 = dma.done [#allocation9], 256
    $region45: #{tpu_custom_call.1} parent=1 // pred_fallthru
      _
    // Predicated region
    $region46: #{tpu_custom_call.1} parent=1 // pred_check
      _
    $region47: #{tpu_custom_call.1} parent=1 // pred_check_branch
      %113 = sbr.rel (0) target = $region49
    $region48: #{tpu_custom_call.1} parent=1 // pred_region
      %115 = dma.done [#allocation12], 1024
    $region49: #{tpu_custom_call.1} parent=1 // pred_fallthru
      _
    %v116 = vld [vmem:[#allocation2] sm:$0xff]
    %v117 = vld [vmem:[#allocation2 + $0x8] sm:$0xff]
    %v118 = vld [vmem:[#allocation2 + $0x10] sm:$0xff]
    %v119 = vld [vmem:[#allocation2 + $0x18] sm:$0xff]
    %120 = vadd.xlane.f32.xlu0 %v116
    %v121 = vpop.xlane.xlu0 %120
    %122 = vadd.xlane.f32.xlu0 %v117
    %v123 = vpop.xlane.xlu0 %122
    %124 = vadd.xlane.f32.xlu0 %v118
    %v125 = vpop.xlane.xlu0 %124
    %126 = vadd.xlane.f32.xlu0 %v119
    %v127 = vpop.xlane.xlu0 %126
    %v128 = vmul.f32 %v116, %v116
    %v129 = vmul.f32 %v117, %v117
    %v130 = vmul.f32 %v118, %v118
    %v131 = vmul.f32 %v119, %v119
    %132 = vadd.xlane.f32.xlu0 %v128
    %v133 = vpop.xlane.xlu0 %132
    %134 = vadd.xlane.f32.xlu0 %v129
    %v135 = vpop.xlane.xlu0 %134
    %136 = vadd.xlane.f32.xlu0 %v130
    %v137 = vpop.xlane.xlu0 %136
    %138 = vadd.xlane.f32.xlu0 %v131
    %v139 = vpop.xlane.xlu0 %138
    %v140 = vmul.f32 %v121, 0.03125
    %v141 = vmul.f32 %v123, 0.03125
    %v142 = vmul.f32 %v125, 0.03125
    %v143 = vmul.f32 %v127, 0.03125
    %v144 = vmul.f32 %v133, 0.03125
    %v145 = vmul.f32 %v135, 0.03125
    %v146 = vmul.f32 %v137, 0.03125
    %v147 = vmul.f32 %v139, 0.03125
    %v148 = vmul.f32 %v140, %v140
    %v149 = vmul.f32 %v141, %v141
    %v150 = vmul.f32 %v142, %v142
    %v151 = vmul.f32 %v143, %v143
    %v152 = vsub.f32 %v144, %v148
    %v153 = vsub.f32 %v145, %v149
    %v154 = vsub.f32 %v146, %v150
    %v155 = vsub.f32 %v147, %v151
    %v156 = vmax.f32 %v152, 0.0
    %v157 = vmax.f32 %v153, 0.0
    %v158 = vmax.f32 %v154, 0.0
    %v159 = vmax.f32 %v155, 0.0
    %v160 = vadd.f32 %v156, 1e-05
    %v161 = vadd.f32 %v157, 1e-05
    %v162 = vadd.f32 %v158, 1e-05
    %v163 = vadd.f32 %v159, 1e-05
    %v164 = vrsqrt.pop %v160
    %v165 = vmul.f32 %v164, %v160
    %v166 = vmul.f32 %v165, %v164
    %v167 = vmul.f32 0.5, %v166
    %v168 = vsub.f32 1.5, %v167
    %v169 = vmul.f32 %v164, %v168
    %vm170 = vweird.f32 %v160
    %vm171 = vweird.f32 %v164
    %vm172 = vmor %vm170, %vm171
    %v173 = vsel %vm172, %v164, %v169
    %v174 = vrsqrt.pop %v161
    %v175 = vmul.f32 %v174, %v161
    %v176 = vmul.f32 %v175, %v174
    %v177 = vmul.f32 0.5, %v176
    %v178 = vsub.f32 1.5, %v177
    %v179 = vmul.f32 %v174, %v178
    %vm180 = vweird.f32 %v161
    %vm181 = vweird.f32 %v174
    %vm182 = vmor %vm180, %vm181
    %v183 = vsel %vm182, %v174, %v179
    %v184 = vrsqrt.pop %v162
    %v185 = vmul.f32 %v184, %v162
    %v186 = vmul.f32 %v185, %v184
    %v187 = vmul.f32 0.5, %v186
    %v188 = vsub.f32 1.5, %v187
    %v189 = vmul.f32 %v184, %v188
    %vm190 = vweird.f32 %v162
    %vm191 = vweird.f32 %v184
    %vm192 = vmor %vm190, %vm191
    %v193 = vsel %vm192, %v184, %v189
    %v194 = vrsqrt.pop %v163
    %v195 = vmul.f32 %v194, %v163
    %v196 = vmul.f32 %v195, %v194
    %v197 = vmul.f32 0.5, %v196
    %v198 = vsub.f32 1.5, %v197
    %v199 = vmul.f32 %v194, %v198
    %vm200 = vweird.f32 %v163
    %vm201 = vweird.f32 %v194
    %vm202 = vmor %vm200, %vm201
    %v203 = vsel %vm202, %v194, %v199
    %v204 = vld [vmem:[#allocation5] sm:$0x7]
    %v205 = vsub.f32 %v116, %v140
    %v206 = vsub.f32 %v117, %v141
    %v207 = vsub.f32 %v118, %v142
    %v208 = vsub.f32 %v119, %v143
    %v209 = vmul.f32 %v205, %v173
    %v210 = vmul.f32 %v206, %v183
    %v211 = vmul.f32 %v207, %v193
    %v212 = vmul.f32 %v208, %v203
    %v213 = vperm.slane %v204, 0
    %v214 = vmul.f32 %v209, %v213
    %v215 = vmul.f32 %v210, %v213
    %v216 = vmul.f32 %v211, %v213
    %v217 = vmul.f32 %v212, %v213
    %v218 = vperm.slane %v204, 1
    %v219 = vadd.f32 %v214, %v218
    %v220 = vadd.f32 %v215, %v218
    %v221 = vadd.f32 %v216, %v218
    %v222 = vadd.f32 %v217, %v218
    %v223 = vld [vmem:[#allocation10] sm:$0xff]
    %v224 = vld [vmem:[#allocation10 + $0x8] sm:$0xf]
    %v225 = vpack.c.bf16 %v220, %v219
    %v226 = vpack.c.bf16 %v222, %v221
    %v227 = vld [vmem:[#allocation7] sm:$0xf]
    %v228 = vld [vmem:[#allocation7 + $0x4] sm:$0xf]
    %v229 = vld [vmem:[#allocation7 + $0x8] sm:$0xf]
    %v230 = vld [vmem:[#allocation7 + $0xc] sm:$0xf]
    %v231 = vld [vmem:[#allocation7 + $0x10] sm:$0xf]
    %v232 = vld [vmem:[#allocation7 + $0x14] sm:$0xf]
    %v233 = vld [vmem:[#allocation7 + $0x18] sm:$0xf]
    %v234 = vld [vmem:[#allocation7 + $0x1c] sm:$0xf]
    %v235 = vld [vmem:[#allocation7 + $0x20] sm:$0xf]
    %v236 = vld [vmem:[#allocation7 + $0x24] sm:$0xf]
    %v237 = vld [vmem:[#allocation7 + $0x28] sm:$0xf]
    %v238 = vld [vmem:[#allocation7 + $0x2c] sm:$0xf]
    %v239 = vld [vmem:[#allocation7 + $0x30] sm:$0xf]
    %v240 = vld [vmem:[#allocation7 + $0x34] sm:$0xf]
    %v241 = vld [vmem:[#allocation7 + $0x38] sm:$0xf]
    %v242 = vld [vmem:[#allocation7 + $0x3c] sm:$0xf]
    %v243 = vperm.slane %v223, 0
    %v260 = vunpack.c.l.b16 %v227
    %v261 = vunpack.c.l.b16 %v228
    %v262 = vunpack.c.l.b16 %v229
    %v263 = vunpack.c.l.b16 %v230
    %v264 = vunpack.c.l.b16 %v231
    %v265 = vunpack.c.l.b16 %v232
    %v266 = vunpack.c.l.b16 %v233
    %v267 = vunpack.c.l.b16 %v234
    %v268 = vunpack.c.l.b16 %v235
    %v269 = vunpack.c.l.b16 %v236
    %v270 = vunpack.c.l.b16 %v237
    %v271 = vunpack.c.l.b16 %v238
    %v272 = vunpack.c.l.b16 %v239
    %v273 = vunpack.c.l.b16 %v240
    %v274 = vunpack.c.l.b16 %v241
    %v275 = vunpack.c.l.b16 %v242
    %v276 = vpack.c.b16 %v261, %v260
    %v277 = vpack.c.b16 %v263, %v262
    %v278 = vpack.c.b16 %v265, %v264
    %v279 = vpack.c.b16 %v267, %v266
    %v280 = vpack.c.b16 %v269, %v268
    %v281 = vpack.c.b16 %v271, %v270
    %v282 = vpack.c.b16 %v273, %v272
    %v283 = vpack.c.b16 %v275, %v274
    %292 = vmatpush.bf16.msra.mxu0 %v283
    %293 = vmatpush.bf16.msra.mxu0 %v282
    %294 = vmatpush.bf16.msra.mxu0 %v281
    %295 = vmatpush.bf16.msra.mxu0 %v280
    %296 = vmatpush.bf16.msra.mxu0 %v279
    %297 = vmatpush.bf16.msra.mxu0 %v278
    %298 = vmatpush.bf16.msra.mxu0 %v277
    %299 = vmatpush.bf16.msra.mxu0 %v276
    %300 = vmatmul.bf16.gmra.mxu0 %v225
    %v301 = vpop.f32.mrf.mxu0
    %v302 = vadd.f32 %v243, %v301
    %v303 = vpop.f32.mrf.mxu0
    %v304 = vadd.f32 %v243, %v303
    %305 = vmatmul.bf16.gmra.mxu0 %v226
    %v306 = vpop.f32.mrf.mxu0
    %v307 = vadd.f32 %v243, %v306
    %v308 = vpop.f32.mrf.mxu0
    %v309 = vadd.f32 %v243, %v308
    %310 = vdwg.mxu0
    %v311 = vld [vmem:[#allocation8] sm:$0xf]
    %v312 = vld [vmem:[#allocation8 + $0x4] sm:$0xf]
    %v313 = vld [vmem:[#allocation8 + $0x8] sm:$0xf]
    %v314 = vld [vmem:[#allocation8 + $0xc] sm:$0xf]
    %v315 = vld [vmem:[#allocation8 + $0x10] sm:$0xf]
    %v316 = vld [vmem:[#allocation8 + $0x14] sm:$0xf]
    %v317 = vld [vmem:[#allocation8 + $0x18] sm:$0xf]
    %v318 = vld [vmem:[#allocation8 + $0x1c] sm:$0xf]
    %v319 = vld [vmem:[#allocation8 + $0x20] sm:$0xf]
    %v320 = vld [vmem:[#allocation8 + $0x24] sm:$0xf]
    %v321 = vld [vmem:[#allocation8 + $0x28] sm:$0xf]
    %v322 = vld [vmem:[#allocation8 + $0x2c] sm:$0xf]
    %v323 = vld [vmem:[#allocation8 + $0x30] sm:$0xf]
    %v324 = vld [vmem:[#allocation8 + $0x34] sm:$0xf]
    %v325 = vld [vmem:[#allocation8 + $0x38] sm:$0xf]
    %v326 = vld [vmem:[#allocation8 + $0x3c] sm:$0xf]
    %v327 = vperm.slane %v223, 1
    %v344 = vunpack.c.l.b16 %v311
    %v345 = vunpack.c.l.b16 %v312
    %v346 = vunpack.c.l.b16 %v313
    %v347 = vunpack.c.l.b16 %v314
    %v348 = vunpack.c.l.b16 %v315
    %v349 = vunpack.c.l.b16 %v316
    %v350 = vunpack.c.l.b16 %v317
    %v351 = vunpack.c.l.b16 %v318
    %v352 = vunpack.c.l.b16 %v319
    %v353 = vunpack.c.l.b16 %v320
    %v354 = vunpack.c.l.b16 %v321
    %v355 = vunpack.c.l.b16 %v322
    %v356 = vunpack.c.l.b16 %v323
    %v357 = vunpack.c.l.b16 %v324
    %v358 = vunpack.c.l.b16 %v325
    %v359 = vunpack.c.l.b16 %v326
    %v360 = vpack.c.b16 %v345, %v344
    %v361 = vpack.c.b16 %v347, %v346
    %v362 = vpack.c.b16 %v349, %v348
    %v363 = vpack.c.b16 %v351, %v350
    %v364 = vpack.c.b16 %v353, %v352
    %v365 = vpack.c.b16 %v355, %v354
    %v366 = vpack.c.b16 %v357, %v356
    %v367 = vpack.c.b16 %v359, %v358
    %376 = vmatpush.bf16.msra.mxu0 %v367
    %377 = vmatpush.bf16.msra.mxu0 %v366
    %378 = vmatpush.bf16.msra.mxu0 %v365
    %379 = vmatpush.bf16.msra.mxu0 %v364
    %380 = vmatpush.bf16.msra.mxu0 %v363
    %381 = vmatpush.bf16.msra.mxu0 %v362
    %382 = vmatpush.bf16.msra.mxu0 %v361
    %383 = vmatpush.bf16.msra.mxu0 %v360
    %384 = vmatmul.bf16.gmra.mxu0 %v225
    %v385 = vpop.f32.mrf.mxu0
    %v386 = vadd.f32 %v327, %v385
    %v387 = vpop.f32.mrf.mxu0
    %v388 = vadd.f32 %v327, %v387
    %389 = vmatmul.bf16.gmra.mxu0 %v226
    %v390 = vpop.f32.mrf.mxu0
    %v391 = vadd.f32 %v327, %v390
    %v392 = vpop.f32.mrf.mxu0
    %v393 = vadd.f32 %v327, %v392
    %394 = vdwg.mxu0
    %v395 = vxor.u32 %v386, 2147483648
    %v396 = vxor.u32 %v388, 2147483648
    %v397 = vxor.u32 %v391, 2147483648
    %v398 = vxor.u32 %v393, 2147483648
    %v399 = vmul.f32 %v395, 1.442695
    %v400 = vpow.pop %v399
    %v401 = vmul.f32 %v396, 1.442695
    %v402 = vpow.pop %v401
    %v403 = vmul.f32 %v397, 1.442695
    %v404 = vpow.pop %v403
    %v405 = vmul.f32 %v398, 1.442695
    %v406 = vpow.pop %v405
    %v407 = vadd.f32 %v400, 1.0
    %v408 = vadd.f32 %v402, 1.0
    %v409 = vadd.f32 %v404, 1.0
    %v410 = vadd.f32 %v406, 1.0
    %v411 = vrcp.pop %v407
    %v412 = vmul.f32 %v407, %v411
    %v413 = vsub.f32 1.0, %v412
    %v414 = vmul.f32 %v411, %v413
    %v415 = vadd.f32 %v411, %v414
    %vm416 = vweird.f32 %v407
    %vm417 = vweird.f32 %v411
    %vm418 = vmor %vm416, %vm417
    %v419 = vsel %vm418, %v411, %v415
    %v420 = vand.u32 2147483647, %v407
    %vm421 = vcmp.eq.f32.partialorder %v420, 8.507059e+37
    %v422 = vand.u32 %v407, 2147483648
    %v423 = vor.u32 1.1754944e-38, %v422
    %v424 = vsel %vm421, %v423, %v419
    %v425 = vmul.f32 1.0, %v424
    %v426 = vrcp.pop %v408
    %v427 = vmul.f32 %v408, %v426
    %v428 = vsub.f32 1.0, %v427
    %v429 = vmul.f32 %v426, %v428
    %v430 = vadd.f32 %v426, %v429
    %vm431 = vweird.f32 %v408
    %vm432 = vweird.f32 %v426
    %vm433 = vmor %vm431, %vm432
    %v434 = vsel %vm433, %v426, %v430
    %v435 = vand.u32 2147483647, %v408
    %vm436 = vcmp.eq.f32.partialorder %v435, 8.507059e+37
    %v437 = vand.u32 %v408, 2147483648
    %v438 = vor.u32 1.1754944e-38, %v437
    %v439 = vsel %vm436, %v438, %v434
    %v440 = vmul.f32 1.0, %v439
    %v441 = vrcp.pop %v409
    %v442 = vmul.f32 %v409, %v441
    %v443 = vsub.f32 1.0, %v442
    %v444 = vmul.f32 %v441, %v443
    %v445 = vadd.f32 %v441, %v444
    %vm446 = vweird.f32 %v409
    %vm447 = vweird.f32 %v441
    %vm448 = vmor %vm446, %vm447
    %v449 = vsel %vm448, %v441, %v445
    %v450 = vand.u32 2147483647, %v409
    %vm451 = vcmp.eq.f32.partialorder %v450, 8.507059e+37
    %v452 = vand.u32 %v409, 2147483648
    %v453 = vor.u32 1.1754944e-38, %v452
    %v454 = vsel %vm451, %v453, %v449
    %v455 = vmul.f32 1.0, %v454
    %v456 = vrcp.pop %v410
    %v457 = vmul.f32 %v410, %v456
    %v458 = vsub.f32 1.0, %v457
    %v459 = vmul.f32 %v456, %v458
    %v460 = vadd.f32 %v456, %v459
    %vm461 = vweird.f32 %v410
    %vm462 = vweird.f32 %v456
    %vm463 = vmor %vm461, %vm462
    %v464 = vsel %vm463, %v456, %v460
    %v465 = vand.u32 2147483647, %v410
    %vm466 = vcmp.eq.f32.partialorder %v465, 8.507059e+37
    %v467 = vand.u32 %v410, 2147483648
    %v468 = vor.u32 1.1754944e-38, %v467
    %v469 = vsel %vm466, %v468, %v464
    %v470 = vmul.f32 1.0, %v469
    %v471 = vmul.f32 %v302, %v425
    %v472 = vmul.f32 %v304, %v440
    %v473 = vmul.f32 %v307, %v455
    %v474 = vmul.f32 %v309, %v470
    %v475 = vperm.slane %v223, 5
    %v476 = vmul.f32 %v475, 0.0
    %v477 = vmul.f32 %v471, %v475
    %v478 = vmul.f32 %v472, %v475
    %v479 = vperm.slane %v223, 6
    %v480 = vmul.f32 %v479, 0.0
    %v481 = vmul.f32 %v471, %v479
    %v482 = vmul.f32 %v472, %v479
    %vm486 = vcmask 1046528
    %v487 = vrot.slane %v480, 1
    %v488 = vrot.slane %v481, 1
    %v489 = vsel %vm486, %v487, %v488
    %v490 = vrot.slane %v482, 1
    %v491 = vsel %vm486, %v488, %v490
    %v495 = vadd.f32 %v476, %v489
    %v496 = vadd.f32 %v477, %v491
    %v497 = vadd.f32 %v478, %v490
    %v498 = vperm.slane %v223, 7
    %v499 = vmul.f32 %v498, 0.0
    %v500 = vmul.f32 %v471, %v498
    %v501 = vmul.f32 %v472, %v498
    %vm505 = vcmask 1045504
    %v506 = vrot.slane %v499, 2
    %v507 = vrot.slane %v500, 2
    %v508 = vsel %vm505, %v506, %v507
    %v509 = vrot.slane %v501, 2
    %v510 = vsel %vm505, %v507, %v509
    %v514 = vadd.f32 %v495, %v508
    %v515 = vadd.f32 %v496, %v510
    %v516 = vadd.f32 %v497, %v509
    %v517 = vperm.slane %v224, 0
    %v518 = vmul.f32 %v471, %v517
    %v519 = vmul.f32 %v472, %v517
    %vm522 = vcmask 1044480
    %v523 = vrot.slane %v518, 3
    %v524 = vrot.slane %v519, 3
    %v525 = vsel %vm522, %v523, %v524
    %v529 = vadd.f32 %v514, %v523
    %v530 = vadd.f32 %v515, %v525
    %v531 = vadd.f32 %v516, %v524
    %v532 = vperm.slane %v224, 1
    %v533 = vmul.f32 %v471, %v532
    %v534 = vmul.f32 %v472, %v532
    %v535 = vmul.f32 %v532, 0.0
    %vm539 = vcmask 1043456
    %v540 = vrot.slane %v533, 4
    %v541 = vrot.slane %v534, 4
    %v542 = vsel %vm539, %v540, %v541
    %v543 = vrot.slane %v535, 4
    %v544 = vsel %vm539, %v541, %v543
    %v548 = vadd.f32 %v529, %v540
    %v549 = vadd.f32 %v530, %v542
    %v550 = vadd.f32 %v531, %v544
    %v551 = vperm.slane %v224, 2
    %v552 = vmul.f32 %v471, %v551
    %v553 = vmul.f32 %v472, %v551
    %v554 = vmul.f32 %v551, 0.0
    %vm558 = vcmask 1042432
    %v559 = vrot.slane %v552, 5
    %v560 = vrot.slane %v553, 5
    %v561 = vsel %vm558, %v559, %v560
    %v562 = vrot.slane %v554, 5
    %v563 = vsel %vm558, %v560, %v562
    %v567 = vadd.f32 %v548, %v559
    %v568 = vadd.f32 %v549, %v561
    %v569 = vadd.f32 %v550, %v563
    %v570 = vperm.slane %v224, 3
    %v571 = vmul.f32 %v471, %v570
    %v572 = vmul.f32 %v472, %v570
    %v573 = vmul.f32 %v570, 0.0
    %vm577 = vcmask 1041408
    %v578 = vrot.slane %v571, 6
    %v579 = vrot.slane %v572, 6
    %v580 = vsel %vm577, %v578, %v579
    %v581 = vrot.slane %v573, 6
    %v582 = vsel %vm577, %v579, %v581
    %v586 = vadd.f32 %v567, %v578
    %v587 = vadd.f32 %v568, %v580
    %v588 = vadd.f32 %v569, %v582
    %v589 = vperm.slane %v223, 2
    %v590 = vadd.f32 %v586, %v589
    %v591 = vadd.f32 %v587, %v589
    %v592 = vadd.f32 %v588, %v589
    %v596 = vrot.slane %v590, 5
    %v597 = vrot.slane %v591, 5
    %v598 = vsel %vm558, %v596, %v597
    %v599 = vrot.slane %v592, 5
    %v600 = vsel %vm558, %v597, %v599
    %v603 = vadd.f32 %v598, %v600
    %604 = vadd.xlane.f32.xlu0 %v603
    %v605 = vpop.xlane.xlu0 %604
    %v606 = vrot.slane %v605, 4
    %v607 = vadd.f32 %v605, %v606
    %v608 = vrot.slane %v607, 2
    %v609 = vadd.f32 %v607, %v608
    %v610 = vrot.slane %v609, 1
    %v611 = vadd.f32 %v609, %v610
    %s612 = vtos %v611
    %v613 = vmul.f32 %v590, %v590
    %v614 = vmul.f32 %v591, %v591
    %v615 = vmul.f32 %v592, %v592
    %v619 = vrot.slane %v613, 5
    %v620 = vrot.slane %v614, 5
    %v621 = vsel %vm558, %v619, %v620
    %v622 = vrot.slane %v615, 5
    %v623 = vsel %vm558, %v620, %v622
    %v626 = vadd.f32 %v621, %v623
    %627 = vadd.xlane.f32.xlu0 %v626
    %v628 = vpop.xlane.xlu0 %627
    %v629 = vrot.slane %v628, 4
    %v630 = vadd.f32 %v628, %v629
    %v631 = vrot.slane %v630, 2
    %v632 = vadd.f32 %v630, %v631
    %v633 = vrot.slane %v632, 1
    %v634 = vadd.f32 %v632, %v633
    %s635 = vtos %v634
    %s636 = smul.f32 %s612, 0.0009765625
    %s637 = smul.f32 %s635, 0.0009765625
    %s638 = smul.f32 %s636, %s636
    %s639 = ssub.f32 %s637, %s638
    %s640 = smax.f32 %s639, 0.0
    %s641 = sadd.f32 %s640, 1e-05
    %v642 = vstv %s641
    %v643 = vrsqrt.pop %v642
    %v644 = vmul.f32 %v643, %v642
    %v645 = vmul.f32 %v644, %v643
    %v646 = vmul.f32 0.5, %v645
    %v647 = vsub.f32 1.5, %v646
    %v648 = vmul.f32 %v643, %v647
    %vm649 = vweird.f32 %v642
    %vm650 = vweird.f32 %v643
    %vm651 = vmor %vm649, %vm650
    %v652 = vsel %vm651, %v643, %v648
    %s653 = vtos %v652
    %v654 = vstv %s653
    %v655 = vmul.f32 %v223, %v654
    %v656 = vstv %s636
    %v657 = vmul.f32 %v656, %v655
    %v659 = vrot.slane %v657, 7
    %v661 = vsub.f32 %v223, %v659
    %v662 = vperm.slane %v655, 3
    %v663 = vmul.f32 %v590, %v662
    %v664 = vmul.f32 %v591, %v662
    %v665 = vmul.f32 %v592, %v662
    %v666 = vperm.slane %v661, 4
    %v667 = vadd.f32 %v663, %v666
    %v668 = vadd.f32 %v664, %v666
    %v669 = vadd.f32 %v665, %v666
    %vm670 = vcmp.ge.f32.partialorder %v667, 0.0
    %vm671 = vcmp.ge.f32.partialorder %v668, 0.0
    %vm672 = vcmp.ge.f32.partialorder %v669, 0.0
    %v673 = vmul.f32 %v667, 0.3
    %v674 = vmul.f32 %v668, 0.3
    %v675 = vmul.f32 %v669, 0.3
    %v676 = vsel %vm670, %v667, %v673
    %v677 = vsel %vm671, %v668, %v674
    %v678 = vsel %vm672, %v669, %v675
    %v679 = vmul.f32 %v473, %v475
    %v680 = vmul.f32 %v474, %v475
    %v681 = vmul.f32 %v473, %v479
    %v682 = vmul.f32 %v474, %v479
    %v685 = vrot.slane %v681, 1
    %v686 = vsel %vm486, %v487, %v685
    %v687 = vrot.slane %v682, 1
    %v688 = vsel %vm486, %v685, %v687
    %v692 = vadd.f32 %v476, %v686
    %v693 = vadd.f32 %v679, %v688
    %v694 = vadd.f32 %v680, %v687
    %v695 = vmul.f32 %v473, %v498
    %v696 = vmul.f32 %v474, %v498
    %v699 = vrot.slane %v695, 2
    %v700 = vsel %vm505, %v506, %v699
    %v701 = vrot.slane %v696, 2
    %v702 = vsel %vm505, %v699, %v701
    %v706 = vadd.f32 %v692, %v700
    %v707 = vadd.f32 %v693, %v702
    %v708 = vadd.f32 %v694, %v701
    %v709 = vmul.f32 %v473, %v517
    %v710 = vmul.f32 %v474, %v517
    %v713 = vrot.slane %v709, 3
    %v714 = vrot.slane %v710, 3
    %v715 = vsel %vm522, %v713, %v714
    %v719 = vadd.f32 %v706, %v713
    %v720 = vadd.f32 %v707, %v715
    %v721 = vadd.f32 %v708, %v714
    %v722 = vmul.f32 %v473, %v532
    %v723 = vmul.f32 %v474, %v532
    %v726 = vrot.slane %v722, 4
    %v727 = vrot.slane %v723, 4
    %v728 = vsel %vm539, %v726, %v727
    %v729 = vsel %vm539, %v727, %v543
    %v733 = vadd.f32 %v719, %v726
    %v734 = vadd.f32 %v720, %v728
    %v735 = vadd.f32 %v721, %v729
    %v736 = vmul.f32 %v473, %v551
    %v737 = vmul.f32 %v474, %v551
    %v740 = vrot.slane %v736, 5
    %v741 = vrot.slane %v737, 5
    %v742 = vsel %vm558, %v740, %v741
    %v743 = vsel %vm558, %v741, %v562
    %v747 = vadd.f32 %v733, %v740
    %v748 = vadd.f32 %v734, %v742
    %v749 = vadd.f32 %v735, %v743
    %v750 = vmul.f32 %v473, %v570
    %v751 = vmul.f32 %v474, %v570
    %v754 = vrot.slane %v750, 6
    %v755 = vrot.slane %v751, 6
    %v756 = vsel %vm577, %v754, %v755
    %v757 = vsel %vm577, %v755, %v581
    %v761 = vadd.f32 %v747, %v754
    %v762 = vadd.f32 %v748, %v756
    %v763 = vadd.f32 %v749, %v757
    %v764 = vadd.f32 %v761, %v589
    %v765 = vadd.f32 %v762, %v589
    %v766 = vadd.f32 %v763, %v589
    %v770 = vrot.slane %v764, 5
    %v771 = vrot.slane %v765, 5
    %v772 = vsel %vm558, %v770, %v771
    %v773 = vrot.slane %v766, 5
    %v774 = vsel %vm558, %v771, %v773
    %v777 = vadd.f32 %v772, %v774
    %778 = vadd.xlane.f32.xlu0 %v777
    %v779 = vpop.xlane.xlu0 %778
    %v780 = vrot.slane %v779, 4
    %v781 = vadd.f32 %v779, %v780
    %v782 = vrot.slane %v781, 2
    %v783 = vadd.f32 %v781, %v782
    %v784 = vrot.slane %v783, 1
    %v785 = vadd.f32 %v783, %v784
    %s786 = vtos %v785
    %v787 = vmul.f32 %v764, %v764
    %v788 = vmul.f32 %v765, %v765
    %v789 = vmul.f32 %v766, %v766
    %v793 = vrot.slane %v787, 5
    %v794 = vrot.slane %v788, 5
    %v795 = vsel %vm558, %v793, %v794
    %v796 = vrot.slane %v789, 5
    %v797 = vsel %vm558, %v794, %v796
    %v800 = vadd.f32 %v795, %v797
    %801 = vadd.xlane.f32.xlu0 %v800
    %v802 = vpop.xlane.xlu0 %801
    %v803 = vrot.slane %v802, 4
    %v804 = vadd.f32 %v802, %v803
    %v805 = vrot.slane %v804, 2
    %v806 = vadd.f32 %v804, %v805
    %v807 = vrot.slane %v806, 1
    %v808 = vadd.f32 %v806, %v807
    %s809 = vtos %v808
    %s810 = smul.f32 %s786, 0.0009765625
    %s811 = smul.f32 %s809, 0.0009765625
    %s812 = smul.f32 %s810, %s810
    %s813 = ssub.f32 %s811, %s812
    %s814 = smax.f32 %s813, 0.0
    %s815 = sadd.f32 %s814, 1e-05
    %v816 = vstv %s815
    %v817 = vrsqrt.pop %v816
    %v818 = vmul.f32 %v817, %v816
    %v819 = vmul.f32 %v818, %v817
    %v820 = vmul.f32 0.5, %v819
    %v821 = vsub.f32 1.5, %v820
    %v822 = vmul.f32 %v817, %v821
    %vm823 = vweird.f32 %v816
    %vm824 = vweird.f32 %v817
    %vm825 = vmor %vm823, %vm824
    %v826 = vsel %vm825, %v817, %v822
    %s827 = vtos %v826
    %v828 = vstv %s827
    %v829 = vmul.f32 %v223, %v828
    %v830 = vstv %s810
    %v831 = vmul.f32 %v830, %v829
    %v833 = vrot.slane %v831, 7
    %v835 = vsub.f32 %v223, %v833
    %v836 = vperm.slane %v829, 3
    %v837 = vmul.f32 %v764, %v836
    %v838 = vmul.f32 %v765, %v836
    %v839 = vmul.f32 %v766, %v836
    %v840 = vperm.slane %v835, 4
    %v841 = vadd.f32 %v837, %v840
    %v842 = vadd.f32 %v838, %v840
    %v843 = vadd.f32 %v839, %v840
    %vm844 = vcmp.ge.f32.partialorder %v841, 0.0
    %vm845 = vcmp.ge.f32.partialorder %v842, 0.0
    %vm846 = vcmp.ge.f32.partialorder %v843, 0.0
    %v847 = vmul.f32 %v841, 0.3
    %v848 = vmul.f32 %v842, 0.3
    %v849 = vmul.f32 %v843, 0.3
    %v850 = vsel %vm844, %v841, %v847
    %v851 = vsel %vm845, %v842, %v848
    %v852 = vsel %vm846, %v843, %v849
    %v856 = vrot.slane %v676, 5
    %v857 = vrot.slane %v677, 5
    %v858 = vsel %vm558, %v856, %v857
    %v859 = vrot.slane %v678, 5
    %v860 = vsel %vm558, %v857, %v859
    %v866 = vrot.slane %v850, 5
    %v867 = vrot.slane %v851, 5
    %v868 = vsel %vm558, %v866, %v867
    %v869 = vrot.slane %v852, 5
    %v870 = vsel %vm558, %v867, %v869
    %v873 = vpack.c.bf16 %v860, %v858
    %v874 = vpack.c.bf16 %v870, %v868
    %v875 = vld [vmem:[#allocation11] sm:$0xf]
    %v876 = vld [vmem:[#allocation11 + $0x4] sm:$0xf]
    %v877 = vld [vmem:[#allocation11 + $0x8] sm:$0xf]
    %v878 = vld [vmem:[#allocation11 + $0xc] sm:$0xf]
    %v879 = vld [vmem:[#allocation11 + $0x10] sm:$0xf]
    %v880 = vld [vmem:[#allocation11 + $0x14] sm:$0xf]
    %v881 = vld [vmem:[#allocation11 + $0x18] sm:$0xf]
    %v882 = vld [vmem:[#allocation11 + $0x1c] sm:$0xf]
    %v883 = vld [vmem:[#allocation11 + $0x20] sm:$0xf]
    %v884 = vld [vmem:[#allocation11 + $0x24] sm:$0xf]
    %v885 = vld [vmem:[#allocation11 + $0x28] sm:$0xf]
    %v886 = vld [vmem:[#allocation11 + $0x2c] sm:$0xf]
    %v887 = vld [vmem:[#allocation11 + $0x30] sm:$0xf]
    %v888 = vld [vmem:[#allocation11 + $0x34] sm:$0xf]
    %v889 = vld [vmem:[#allocation11 + $0x38] sm:$0xf]
    %v890 = vld [vmem:[#allocation11 + $0x3c] sm:$0xf]
    %v891 = vperm.slane %v204, 2
    %v908 = vunpack.c.l.b16 %v875
    %v909 = vunpack.c.l.b16 %v876
    %v910 = vunpack.c.l.b16 %v877
    %v911 = vunpack.c.l.b16 %v878
    %v912 = vunpack.c.l.b16 %v879
    %v913 = vunpack.c.l.b16 %v880
    %v914 = vunpack.c.l.b16 %v881
    %v915 = vunpack.c.l.b16 %v882
    %v916 = vunpack.c.l.b16 %v883
    %v917 = vunpack.c.l.b16 %v884
    %v918 = vunpack.c.l.b16 %v885
    %v919 = vunpack.c.l.b16 %v886
    %v920 = vunpack.c.l.b16 %v887
    %v921 = vunpack.c.l.b16 %v888
    %v922 = vunpack.c.l.b16 %v889
    %v923 = vunpack.c.l.b16 %v890
    %v924 = vpack.c.b16 %v909, %v908
    %v925 = vpack.c.b16 %v911, %v910
    %v926 = vpack.c.b16 %v913, %v912
    %v927 = vpack.c.b16 %v915, %v914
    %v928 = vpack.c.b16 %v917, %v916
    %v929 = vpack.c.b16 %v919, %v918
    %v930 = vpack.c.b16 %v921, %v920
    %v931 = vpack.c.b16 %v923, %v922
    %940 = vmatpush.bf16.msra.mxu0 %v931
    %941 = vmatpush.bf16.msra.mxu0 %v930
    %942 = vmatpush.bf16.msra.mxu0 %v929
    %943 = vmatpush.bf16.msra.mxu0 %v928
    %944 = vmatpush.bf16.msra.mxu0 %v927
    %945 = vmatpush.bf16.msra.mxu0 %v926
    %946 = vmatpush.bf16.msra.mxu0 %v925
    %947 = vmatpush.bf16.msra.mxu0 %v924
    %948 = vmatmul.bf16.gmra.mxu0 %v873
    %v949 = vpop.f32.mrf.mxu0
    %v950 = vadd.f32 %v891, %v949
    %v951 = vpop.f32.mrf.mxu0
    %v952 = vadd.f32 %v891, %v951
    %953 = vmatmul.bf16.gmra.mxu0 %v874
    %v954 = vpop.f32.mrf.mxu0
    %v955 = vadd.f32 %v891, %v954
    %v956 = vpop.f32.mrf.mxu0
    %v957 = vadd.f32 %v891, %v956
    %958 = vdwg.mxu0
    %959 = vst [vmem:[#allocation13] sm:$0xff] %v950
    %960 = vst [vmem:[#allocation13 + $0x8] sm:$0xff] %v952
    %961 = vst [vmem:[#allocation13 + $0x10] sm:$0xff] %v955
    %962 = vst [vmem:[#allocation13 + $0x18] sm:$0xff] %v957
    // Predicated region
    $region50: #{tpu_custom_call.1} parent=1 // pred_check
      _
    $region51: #{tpu_custom_call.1} parent=1 // pred_check_branch
      %964 = sbr.rel (0) target = $region53
    $region52: #{tpu_custom_call.1} parent=1 // pred_region
      %966 = vsyncadd [#allocation4], 0
      %s967 = sshll.u32 [#allocation13], 4
      %s968 = int_to_ptr.vmem [resolvable:$true] %s967
      %s969 = sshll.u32 %s6, 4
      %s970 = int_to_ptr.hbm [resolvable:$true] %s969
      %975 = dma.vmem_to_hbm [thread:$0]  %s968, 512, %s970, [#allocation4], 128, 128, 8
    $region53: #{tpu_custom_call.1} parent=1 // pred_fallthru
      _
    // Predicated region
    $region54: #{tpu_custom_call.1} parent=1 // pred_check
      _
    $region55: #{tpu_custom_call.1} parent=1 // pred_check_branch
      %977 = sbr.rel (0) target = $region57
    $region56: #{tpu_custom_call.1} parent=1 // pred_region
      %979 = dma.done [#allocation4], 512
    $region57: #{tpu_custom_call.1} parent=1 // pred_fallthru
      _
    %980 = vsyncpa [#allocation3], 1
    %981 = vsyncpa [#allocation6], 1
    %982 = vsyncpa [#allocation9], 1
    %983 = vsyncpa [#allocation12], 1
    %984 = vsyncpa [#allocation4], 1

</llo_original>
